<compile_context>
chip_gen: v7x
topology: tpu7x:2x2x1
jax: 0.10.0
libtpu: 0.0.40
codegen_flags: <defaults>
</compile_context>

<pallas_src>
import functools

import jax
import jax.numpy as jnp
from jax.experimental import pallas as pl
from jax.experimental.pallas import tpu as pltpu

HIDDEN = 512
BN_EPS = 1e-5
LANE = 128


def _round_up(n, m=LANE):
    return ((n + m - 1) // m) * m


def _pad_to(x, size, axis):
    pad = size - x.shape[axis]
    if pad == 0:
        return x
    widths = [(0, 0)] * x.ndim
    widths[axis] = (0, pad)
    return jnp.pad(x, widths)


def _generator_kernel(s_ref, g_ref, n_ref, w1s_ref, w1g_ref, w1n_ref,
                      w2_ref, w3_ref, bn_ref, b3_ref, o_ref):
    """Fused forward. bn_ref rows are [g1, be1, g2, be2] -> shape (4, 512)."""
    inv_b = 1.0 / s_ref.shape[0]                      # static batch size
    bn = bn_ref[...]                                  # (4, 512) f32, single small DMA

    def bn_relu_bf16(h, gamma, beta):
        # PyTorch training-mode BN (biased variance) fused into one FMA over h,
        # then ReLU + bf16 cast in the same pass (next consumer is an MXU dot).
        mean = jnp.sum(h, axis=0, keepdims=True) * inv_b
        var = jnp.maximum(
            jnp.sum(h * h, axis=0, keepdims=True) * inv_b - mean * mean, 0.0)
        scale = gamma * jax.lax.rsqrt(var + BN_EPS)   # (1, 512)
        shift = beta - mean * scale                   # (1, 512)
        return jnp.maximum(h * scale + shift, 0.0).astype(jnp.bfloat16)

    # Layer 1: Linear (bias omitted: exactly cancelled by BN) -> BN -> ReLU.
    # Input concat is fused away: w1 is split into row-blocks, sum of three dots.
    # Kept in f32 (tiny K -> negligible MXU cost, better parity with the f32 reference).
    h = (jnp.dot(s_ref[...], w1s_ref[...], preferred_element_type=jnp.float32)
         + jnp.dot(g_ref[...], w1g_ref[...], preferred_element_type=jnp.float32)
         + jnp.dot(n_ref[...], w1n_ref[...], preferred_element_type=jnp.float32))
    h = bn_relu_bf16(h, bn[0:1], bn[1:2])

    # Layer 2: Linear (bias omitted) -> BN -> ReLU  (bf16 operands, f32 accumulation)
    h = jnp.dot(h, w2_ref[...], preferred_element_type=jnp.float32)
    h = bn_relu_bf16(h, bn[2:3], bn[3:4])

    # Layer 3: Linear + bias -> tanh (f32 epilogue on EUP)
    out = jnp.dot(h, w3_ref[...], preferred_element_type=jnp.float32)
    o_ref[...] = jnp.tanh(out + b3_ref[...])


@functools.partial(jax.jit, static_argnames=("ac_dim",))
def generator_forward(state, goal, noise, kparams, ac_dim):
    """Pallas-backed Generator.forward. state/goal/noise: (B, *_dim) float32."""
    batch = state.shape[0]
    ac_pad = kparams["w3"].shape[1]

    out = pl.pallas_call(
        _generator_kernel,
        out_shape=jax.ShapeDtypeStruct((batch, ac_pad), jnp.float32),
        in_specs=[pl.BlockSpec(memory_space=pltpu.VMEM)] * 10,
        out_specs=pl.BlockSpec(memory_space=pltpu.VMEM),
    )(state, goal, noise,
      kparams["w1s"], kparams["w1g"], kparams["w1n"],
      kparams["w2"], kparams["w3"], kparams["bn"], kparams["b3"])
    # Output stays lane-padded (128) inside the kernel; slice to ac_dim outside.
    return out[:, :ac_dim]


def init_params(key, input_dim, ac_dim):
    """PyTorch-default init: Linear U(-1/sqrt(fan_in), 1/sqrt(fan_in)); BN gamma=1, beta=0."""
    ks = jax.random.split(key, 6)

    def linear(kw, kb, fan_in, fan_out):
        bound = 1.0 / float(fan_in) ** 0.5
        w = jax.random.uniform(kw, (fan_in, fan_out), jnp.float32, -bound, bound)
        b = jax.random.uniform(kb, (1, fan_out), jnp.float32, -bound, bound)
        return w, b

    w1, b1 = linear(ks[0], ks[1], input_dim, HIDDEN)
    w2, b2 = linear(ks[2], ks[3], HIDDEN, HIDDEN)
    w3, b3 = linear(ks[4], ks[5], HIDDEN, ac_dim)
    return {
        "w1": w1, "b1": b1,
        "g1": jnp.ones((1, HIDDEN), jnp.float32), "be1": jnp.zeros((1, HIDDEN), jnp.float32),
        "w2": w2, "b2": b2,
        "g2": jnp.ones((1, HIDDEN), jnp.float32), "be2": jnp.zeros((1, HIDDEN), jnp.float32),
        "w3": w3, "b3": b3,
    }


def pack_params(p, state_dim, goal_dim, noise_dim):
    """One-time kernel-side packing (outside the per-call jit path).

    - w1 is split into state/goal/noise row-blocks (kept f32) so the kernel never needs
      a concatenated/padded input.
    - w2/w3 stored bf16 (MXU operands), w3/b3 lane-padded to 128.
    - b1/b2 intentionally omitted: with training-mode BN right after the Linear,
      (h + b) - mean(h + b) == h - mean(h), so the bias has no effect on the output.
    - BN per-feature params packed into one (4, 512) slab -> one DMA instead of four.
    """
    ac_pad = _round_up(p["w3"].shape[1])
    w1 = p["w1"].astype(jnp.float32)
    return {
        "w1s": w1[:state_dim],
        "w1g": w1[state_dim:state_dim + goal_dim],
        "w1n": w1[state_dim + goal_dim:],
        "w2": p["w2"].astype(jnp.bfloat16),
        "w3": _pad_to(p["w3"], ac_pad, axis=1).astype(jnp.bfloat16),
        "b3": _pad_to(p["b3"], ac_pad, axis=1).astype(jnp.float32),
        "bn": jnp.concatenate(
            [p["g1"], p["be1"], p["g2"], p["be2"]], axis=0).astype(jnp.float32),
    }


def generator_forward_ref(state, goal, noise, params):
    """Pure-JAX f32 reference with exact PyTorch semantics (biases + training-mode BN)."""
    x = jnp.concatenate([state, goal, noise], axis=-1).astype(jnp.float32)

    def bn(h, g, b):
        m = jnp.mean(h, axis=0, keepdims=True)
        v = jnp.mean((h - m) ** 2, axis=0, keepdims=True)
        return (h - m) / jnp.sqrt(v + BN_EPS) * g + b

    h = x @ params["w1"] + params["b1"]
    h = jnp.maximum(bn(h, params["g1"], params["be1"]), 0.0)
    h = h @ params["w2"] + params["b2"]
    h = jnp.maximum(bn(h, params["g2"], params["be2"]), 0.0)
    return jnp.tanh(h @ params["w3"] + params["b3"])


if __name__ == "__main__":
    state_dim, ac_dim, goal_dim, noise_dim = 10, 6, 3, 4
    batch = 8
    input_dim = state_dim + goal_dim + noise_dim

    key = jax.random.PRNGKey(0)
    kp, ks, kg, kn = jax.random.split(key, 4)
    params = init_params(kp, input_dim, ac_dim)
    kparams = pack_params(params, state_dim, goal_dim, noise_dim)   # one-time packing

    state = jax.random.normal(ks, (batch, state_dim), jnp.float32)
    goal = jax.random.normal(kg, (batch, goal_dim), jnp.float32)
    noise = jax.random.normal(kn, (batch, noise_dim), jnp.float32)

    out = generator_forward(state, goal, noise, kparams, ac_dim)
    out = jax.block_until_ready(out)

    ref = generator_forward_ref(state, goal, noise, params)
    assert out.shape == (batch, ac_dim), out.shape
    # bf16 MXU operands in layers 2/3 (f32 accumulation) vs f32 reference -> relaxed tolerance.
    err = float(jnp.max(jnp.abs(out - ref)))
    assert err < 3e-2, err

    print("KERNEL_OK")
</pallas_src>

<mosaic_0001>
module attributes {stable_mosaic.version = 11 : i64} {
  func.func @_generator_kernel(%arg0: memref<8x10xf32, #tpu.memory_space<vmem>>, %arg1: memref<8x3xf32, #tpu.memory_space<vmem>>, %arg2: memref<8x4xf32, #tpu.memory_space<vmem>>, %arg3: memref<10x512xf32, #tpu.memory_space<vmem>>, %arg4: memref<3x512xf32, #tpu.memory_space<vmem>>, %arg5: memref<4x512xf32, #tpu.memory_space<vmem>>, %arg6: memref<512x512xbf16, #tpu.memory_space<vmem>>, %arg7: memref<512x128xbf16, #tpu.memory_space<vmem>>, %arg8: memref<4x512xf32, #tpu.memory_space<vmem>>, %arg9: memref<1x128xf32, #tpu.memory_space<vmem>>, %arg10: memref<8x128xf32, #tpu.memory_space<vmem>>) attributes {dimension_semantics = [], scalar_prefetch = 0 : i64, scratch_operands = 0 : i64, tpu.core_type = #tpu.core_type<tc>} {
    %c0 = arith.constant 0 : index
    %c0_0 = arith.constant 0 : index
    %0 = vector.load %arg8[%c0, %c0_0] : memref<4x512xf32, #tpu.memory_space<vmem>>, vector<4x512xf32>
    %c0_1 = arith.constant 0 : index
    %c0_2 = arith.constant 0 : index
    %1 = vector.load %arg0[%c0_1, %c0_2] : memref<8x10xf32, #tpu.memory_space<vmem>>, vector<8x10xf32>
    %c0_3 = arith.constant 0 : index
    %c0_4 = arith.constant 0 : index
    %2 = vector.load %arg3[%c0_3, %c0_4] : memref<10x512xf32, #tpu.memory_space<vmem>>, vector<10x512xf32>
    %cst = arith.constant dense<0.000000e+00> : vector<8x512xf32>
    %3 = tpu.matmul %1, %2, %cst {dimension_numbers = #tpu.dot_dimension_numbers<[1], [0], [0], [1], [0, 0, 1, 1], [], []>} : vector<8x10xf32>, vector<10x512xf32>, vector<8x512xf32> -> vector<8x512xf32>
    %c0_5 = arith.constant 0 : index
    %c0_6 = arith.constant 0 : index
    %4 = vector.load %arg1[%c0_5, %c0_6] : memref<8x3xf32, #tpu.memory_space<vmem>>, vector<8x3xf32>
    %c0_7 = arith.constant 0 : index
    %c0_8 = arith.constant 0 : index
    %5 = vector.load %arg4[%c0_7, %c0_8] : memref<3x512xf32, #tpu.memory_space<vmem>>, vector<3x512xf32>
    %cst_9 = arith.constant dense<0.000000e+00> : vector<8x512xf32>
    %6 = tpu.matmul %4, %5, %cst_9 {dimension_numbers = #tpu.dot_dimension_numbers<[1], [0], [0], [1], [0, 0, 1, 1], [], []>} : vector<8x3xf32>, vector<3x512xf32>, vector<8x512xf32> -> vector<8x512xf32>
    %7 = arith.addf %3, %6 : vector<8x512xf32>
    %c0_10 = arith.constant 0 : index
    %c0_11 = arith.constant 0 : index
    %8 = vector.load %arg2[%c0_10, %c0_11] : memref<8x4xf32, #tpu.memory_space<vmem>>, vector<8x4xf32>
    %c0_12 = arith.constant 0 : index
    %c0_13 = arith.constant 0 : index
    %9 = vector.load %arg5[%c0_12, %c0_13] : memref<4x512xf32, #tpu.memory_space<vmem>>, vector<4x512xf32>
    %cst_14 = arith.constant dense<0.000000e+00> : vector<8x512xf32>
    %10 = tpu.matmul %8, %9, %cst_14 {dimension_numbers = #tpu.dot_dimension_numbers<[1], [0], [0], [1], [0, 0, 1, 1], [], []>} : vector<8x4xf32>, vector<4x512xf32>, vector<8x512xf32> -> vector<8x512xf32>
    %11 = arith.addf %7, %10 : vector<8x512xf32>
    %12 = vector.extract_strided_slice %0 {offsets = [0, 0], sizes = [1, 512], strides = [1, 1]} : vector<4x512xf32> to vector<1x512xf32>
    %13 = vector.extract_strided_slice %0 {offsets = [1, 0], sizes = [1, 512], strides = [1, 1]} : vector<4x512xf32> to vector<1x512xf32>
    %cst_15 = arith.constant dense<0.000000e+00> : vector<512xf32>
    %14 = vector.multi_reduction <add>, %11, %cst_15 [0] : vector<8x512xf32> to vector<512xf32>
    %15 = vector.shape_cast %14 : vector<512xf32> to vector<1x512xf32>
    %cst_16 = arith.constant 1.250000e-01 : f32
    %16 = vector.broadcast %cst_16 : f32 to vector<1x512xf32>
    %17 = arith.mulf %15, %16 : vector<1x512xf32>
    %18 = arith.mulf %11, %11 : vector<8x512xf32>
    %cst_17 = arith.constant dense<0.000000e+00> : vector<512xf32>
    %19 = vector.multi_reduction <add>, %18, %cst_17 [0] : vector<8x512xf32> to vector<512xf32>
    %20 = vector.shape_cast %19 : vector<512xf32> to vector<1x512xf32>
    %cst_18 = arith.constant 1.250000e-01 : f32
    %21 = vector.broadcast %cst_18 : f32 to vector<1x512xf32>
    %22 = arith.mulf %20, %21 : vector<1x512xf32>
    %23 = arith.mulf %17, %17 : vector<1x512xf32>
    %24 = arith.subf %22, %23 : vector<1x512xf32>
    %cst_19 = arith.constant 0.000000e+00 : f32
    %25 = vector.broadcast %cst_19 : f32 to vector<1x512xf32>
    %26 = arith.maximumf %24, %25 : vector<1x512xf32>
    %cst_20 = arith.constant 9.99999974E-6 : f32
    %27 = vector.broadcast %cst_20 : f32 to vector<1x512xf32>
    %28 = arith.addf %26, %27 : vector<1x512xf32>
    %29 = math.rsqrt %28 : vector<1x512xf32>
    %30 = arith.mulf %12, %29 : vector<1x512xf32>
    %31 = arith.mulf %17, %30 : vector<1x512xf32>
    %32 = arith.subf %13, %31 : vector<1x512xf32>
    %33 = vector.broadcast %30 : vector<1x512xf32> to vector<8x512xf32>
    %34 = arith.mulf %11, %33 : vector<8x512xf32>
    %35 = vector.broadcast %32 : vector<1x512xf32> to vector<8x512xf32>
    %36 = arith.addf %34, %35 : vector<8x512xf32>
    %cst_21 = arith.constant 0.000000e+00 : f32
    %37 = vector.broadcast %cst_21 : f32 to vector<8x512xf32>
    %38 = arith.maximumf %36, %37 : vector<8x512xf32>
    %39 = arith.truncf %38 : vector<8x512xf32> to vector<8x512xbf16>
    %c0_22 = arith.constant 0 : index
    %c0_23 = arith.constant 0 : index
    %40 = vector.load %arg6[%c0_22, %c0_23] : memref<512x512xbf16, #tpu.memory_space<vmem>>, vector<512x512xbf16>
    %cst_24 = arith.constant dense<0.000000e+00> : vector<8x512xf32>
    %41 = tpu.matmul %39, %40, %cst_24 {dimension_numbers = #tpu.dot_dimension_numbers<[1], [0], [0], [1], [0, 0, 1, 1], [], []>} : vector<8x512xbf16>, vector<512x512xbf16>, vector<8x512xf32> -> vector<8x512xf32>
    %42 = vector.extract_strided_slice %0 {offsets = [2, 0], sizes = [1, 512], strides = [1, 1]} : vector<4x512xf32> to vector<1x512xf32>
    %43 = vector.extract_strided_slice %0 {offsets = [3, 0], sizes = [1, 512], strides = [1, 1]} : vector<4x512xf32> to vector<1x512xf32>
    %cst_25 = arith.constant dense<0.000000e+00> : vector<512xf32>
    %44 = vector.multi_reduction <add>, %41, %cst_25 [0] : vector<8x512xf32> to vector<512xf32>
    %45 = vector.shape_cast %44 : vector<512xf32> to vector<1x512xf32>
    %cst_26 = arith.constant 1.250000e-01 : f32
    %46 = vector.broadcast %cst_26 : f32 to vector<1x512xf32>
    %47 = arith.mulf %45, %46 : vector<1x512xf32>
    %48 = arith.mulf %41, %41 : vector<8x512xf32>
    %cst_27 = arith.constant dense<0.000000e+00> : vector<512xf32>
    %49 = vector.multi_reduction <add>, %48, %cst_27 [0] : vector<8x512xf32> to vector<512xf32>
    %50 = vector.shape_cast %49 : vector<512xf32> to vector<1x512xf32>
    %cst_28 = arith.constant 1.250000e-01 : f32
    %51 = vector.broadcast %cst_28 : f32 to vector<1x512xf32>
    %52 = arith.mulf %50, %51 : vector<1x512xf32>
    %53 = arith.mulf %47, %47 : vector<1x512xf32>
    %54 = arith.subf %52, %53 : vector<1x512xf32>
    %cst_29 = arith.constant 0.000000e+00 : f32
    %55 = vector.broadcast %cst_29 : f32 to vector<1x512xf32>
    %56 = arith.maximumf %54, %55 : vector<1x512xf32>
    %cst_30 = arith.constant 9.99999974E-6 : f32
    %57 = vector.broadcast %cst_30 : f32 to vector<1x512xf32>
    %58 = arith.addf %56, %57 : vector<1x512xf32>
    %59 = math.rsqrt %58 : vector<1x512xf32>
    %60 = arith.mulf %42, %59 : vector<1x512xf32>
    %61 = arith.mulf %47, %60 : vector<1x512xf32>
    %62 = arith.subf %43, %61 : vector<1x512xf32>
    %63 = vector.broadcast %60 : vector<1x512xf32> to vector<8x512xf32>
    %64 = arith.mulf %41, %63 : vector<8x512xf32>
    %65 = vector.broadcast %62 : vector<1x512xf32> to vector<8x512xf32>
    %66 = arith.addf %64, %65 : vector<8x512xf32>
    %cst_31 = arith.constant 0.000000e+00 : f32
    %67 = vector.broadcast %cst_31 : f32 to vector<8x512xf32>
    %68 = arith.maximumf %66, %67 : vector<8x512xf32>
    %69 = arith.truncf %68 : vector<8x512xf32> to vector<8x512xbf16>
    %c0_32 = arith.constant 0 : index
    %c0_33 = arith.constant 0 : index
    %70 = vector.load %arg7[%c0_32, %c0_33] : memref<512x128xbf16, #tpu.memory_space<vmem>>, vector<512x128xbf16>
    %cst_34 = arith.constant dense<0.000000e+00> : vector<8x128xf32>
    %71 = tpu.matmul %69, %70, %cst_34 {dimension_numbers = #tpu.dot_dimension_numbers<[1], [0], [0], [1], [0, 0, 1, 1], [], []>} : vector<8x512xbf16>, vector<512x128xbf16>, vector<8x128xf32> -> vector<8x128xf32>
    %c0_35 = arith.constant 0 : index
    %c0_36 = arith.constant 0 : index
    %72 = vector.load %arg9[%c0_35, %c0_36] : memref<1x128xf32, #tpu.memory_space<vmem>>, vector<1x128xf32>
    %73 = vector.broadcast %72 : vector<1x128xf32> to vector<8x128xf32>
    %74 = arith.addf %71, %73 : vector<8x128xf32>
    %75 = math.tanh %74 : vector<8x128xf32>
    %c0_37 = arith.constant 0 : index
    %c0_38 = arith.constant 0 : index
    %76 = vector.load %arg10[%c0_37, %c0_38] : memref<8x128xf32, #tpu.memory_space<vmem>>, vector<8x128xf32>
    tpu.vector_store %arg10[%c0_37, %c0_38], %75 {strides = array<i32>} : memref<8x128xf32, #tpu.memory_space<vmem>>, vector<8x128xf32>,
    return
  }
}

</mosaic_0001>

<llo_original>
// kernel: generator_forward.1
$region0: #{generator_forward.1}
  #allocation0 [shape = 'u32[]', space=smem, size = 0x4, offset = 0x4, fixed_abs, tag = 'smem constant byte address 0x4 - core index']
  #allocation1 [shape = 'u32[144,128]{1,0:T(1,128)}', space=vmem, size = 0x12000, scoped, tag = 'internal scratch']
  %s0 = inlined_call_operand.hbm [shape: f32[8,10], index: 0, kind: input, shape index: {}]
  %s1 = inlined_call_operand.vmem [shape: f32[8,3], index: 1, kind: input, shape index: {}]
  %s2 = inlined_call_operand.vmem [shape: f32[8,4], index: 2, kind: input, shape index: {}]
  %s3 = inlined_call_operand.hbm [shape: f32[10,512], index: 3, kind: input, shape index: {}]
  %s4 = inlined_call_operand.vmem [shape: f32[3,512], index: 4, kind: input, shape index: {}]
  %s5 = inlined_call_operand.vmem [shape: f32[4,512], index: 5, kind: input, shape index: {}]
  %s6 = inlined_call_operand.hbm [shape: bf16[512,512], index: 6, kind: input, shape index: {}]
  %s7 = inlined_call_operand.hbm [shape: bf16[512,128], index: 7, kind: input, shape index: {}]
  %s8 = inlined_call_operand.hbm [shape: f32[4,512], index: 8, kind: input, shape index: {}]
  %s9 = inlined_call_operand.vmem [shape: f32[1,128], index: 9, kind: input, shape index: {}]
  %s10 = inlined_call_operand.hbm [shape: f32[8,128], index: 10, kind: output, shape index: {}]
  %s11 = sld [smem:[#allocation0]]
  $region70: #{generator_forward.1} parent=0
    _
  %s13 = ssub.s32 1, %s11
  %s14 = scalar_select 0, %s13, %s11
  $region1: #{generator_forward.1} parent=0
    #allocation2 [shape = 'u8[4096]{0}', space=vmem, size = 0x1000, scoped, tag = 'input window, operand 0, single buffered']
    #allocation3 [shape = 's32[1]{0}', space=sflag, size = 0x4, scoped, tag = 'scoped memory for generator_forward.1']
    #allocation4 [shape = 's32[1]{0}', space=sflag, size = 0x4, scoped, tag = 'scoped memory for generator_forward.1']
    #allocation5 [shape = 'u8[32768]{0}', space=vmem, size = 0x8000, scoped, tag = 'input window, operand 3, single buffered']
    #allocation6 [shape = 's32[1]{0}', space=sflag, size = 0x4, scoped, tag = 'scoped memory for generator_forward.1']
    #allocation7 [shape = 'u8[524288]{0}', space=vmem, size = 0x80000, scoped, tag = 'input window, operand 6, single buffered']
    #allocation8 [shape = 'u8[131072]{0}', space=vmem, size = 0x20000, scoped, tag = 'input window, operand 7, single buffered']
    #allocation9 [shape = 's32[1]{0}', space=sflag, size = 0x4, scoped, tag = 'scoped memory for generator_forward.1']
    #allocation10 [shape = 'u8[8192]{0}', space=vmem, size = 0x2000, scoped, tag = 'input window, operand 8, single buffered']
    #allocation11 [shape = 'u8[4096]{0}', space=vmem, size = 0x1000, scoped, tag = 'output window, operand 0, single buffered']
    %15 = vsyncpa [#allocation3], 0
    %16 = vsyncpa [#allocation6], 0
    %17 = vsyncpa [#allocation9], 0
    %18 = vsyncpa [#allocation4], 0
    // Predicated region
    $region2: #{generator_forward.1} parent=1 // pred_check
      _
    $region3: #{generator_forward.1} parent=1 // pred_check_branch
      %20 = sbr.rel (0) target = $region5
    $region4: #{generator_forward.1} parent=1 // pred_region
      %s22 = ssub.s32 128, 128
      %23 = vsyncadd [#allocation3], %s22
      %s25 = sshll.u32 [#allocation2], 4
      %s26 = int_to_ptr.vmem [resolvable:$true] %s25
      %28 = dma.hbm_to_vmem [thread:$0]  %s0, 128, %s26, [#allocation3]
    $region5: #{generator_forward.1} parent=1 // pred_fallthru
      _
    // Predicated region
    $region6: #{generator_forward.1} parent=1 // pred_check
      _
    $region7: #{generator_forward.1} parent=1 // pred_check_branch
      %30 = sbr.rel (0) target = $region9
    $region8: #{generator_forward.1} parent=1 // pred_region
      _
    $region9: #{generator_forward.1} parent=1 // pred_fallthru
      _
    // Predicated region
    $region10: #{generator_forward.1} parent=1 // pred_check
      _
    $region11: #{generator_forward.1} parent=1 // pred_check_branch
      %32 = sbr.rel (0) target = $region13
    $region12: #{generator_forward.1} parent=1 // pred_region
      _
    $region13: #{generator_forward.1} parent=1 // pred_fallthru
      _
    // Predicated region
    $region14: #{generator_forward.1} parent=1 // pred_check
      _
    $region15: #{generator_forward.1} parent=1 // pred_check_branch
      %34 = sbr.rel (0) target = $region17
    $region16: #{generator_forward.1} parent=1 // pred_region
      %s36 = ssub.s32 1024, 1024
      %37 = vsyncadd [#allocation6], %s36
      %s38 = sshll.u32 [#allocation5], 4
      %s39 = int_to_ptr.vmem [resolvable:$true] %s38
      %44 = dma.hbm_to_vmem [thread:$0]  %s3, 1024, %s39, [#allocation6], 512, 512, 32
    $region17: #{generator_forward.1} parent=1 // pred_fallthru
      _
    // Predicated region
    $region18: #{generator_forward.1} parent=1 // pred_check
      _
    $region19: #{generator_forward.1} parent=1 // pred_check_branch
      %46 = sbr.rel (0) target = $region21
    $region20: #{generator_forward.1} parent=1 // pred_region
      _
    $region21: #{generator_forward.1} parent=1 // pred_fallthru
      _
    // Predicated region
    $region22: #{generator_forward.1} parent=1 // pred_check
      _
    $region23: #{generator_forward.1} parent=1 // pred_check_branch
      %48 = sbr.rel (0) target = $region25
    $region24: #{generator_forward.1} parent=1 // pred_region
      _
    $region25: #{generator_forward.1} parent=1 // pred_fallthru
      _
    // Predicated region
    $region26: #{generator_forward.1} parent=1 // pred_check
      _
    $region27: #{generator_forward.1} parent=1 // pred_check_branch
      %50 = sbr.rel (0) target = $region29
    $region28: #{generator_forward.1} parent=1 // pred_region
      %s52 = ssub.s32 16384, 16384
      %53 = vsyncadd [#allocation6], %s52
      %s54 = sshll.u32 [#allocation7], 4
      %s55 = int_to_ptr.vmem [resolvable:$true] %s54
      %60 = dma.hbm_to_vmem [thread:$0]  %s6, 16384, %s55, [#allocation6], 256, 256, 16
    $region29: #{generator_forward.1} parent=1 // pred_fallthru
      _
    // Predicated region
    $region30: #{generator_forward.1} parent=1 // pred_check
      _
    $region31: #{generator_forward.1} parent=1 // pred_check_branch
      %62 = sbr.rel (0) target = $region33
    $region32: #{generator_forward.1} parent=1 // pred_region
      %s64 = ssub.s32 4096, 4096
      %65 = vsyncadd [#allocation9], %s64
      %s66 = sshll.u32 [#allocation8], 4
      %s67 = int_to_ptr.vmem [resolvable:$true] %s66
      %72 = dma.hbm_to_vmem [thread:$0]  %s7, 4096, %s67, [#allocation9], 64, 64, 4
    $region33: #{generator_forward.1} parent=1 // pred_fallthru
      _
    // Predicated region
    $region34: #{generator_forward.1} parent=1 // pred_check
      _
    $region35: #{generator_forward.1} parent=1 // pred_check_branch
      %74 = sbr.rel (0) target = $region37
    $region36: #{generator_forward.1} parent=1 // pred_region
      %s76 = ssub.s32 256, 256
      %77 = vsyncadd [#allocation9], %s76
      %s79 = sshll.u32 [#allocation10], 4
      %s80 = int_to_ptr.vmem [resolvable:$true] %s79
      %82 = dma.hbm_to_vmem [thread:$0]  %s8, 256, %s80, [#allocation9]
    $region37: #{generator_forward.1} parent=1 // pred_fallthru
      _
    // Predicated region
    $region38: #{generator_forward.1} parent=1 // pred_check
      _
    $region39: #{generator_forward.1} parent=1 // pred_check_branch
      %84 = sbr.rel (0) target = $region41
    $region40: #{generator_forward.1} parent=1 // pred_region
      _
    $region41: #{generator_forward.1} parent=1 // pred_fallthru
      _
    // Predicated region
    $region42: #{generator_forward.1} parent=1 // pred_check
      _
    $region43: #{generator_forward.1} parent=1 // pred_check_branch
      %86 = sbr.rel (0) target = $region45
    $region44: #{generator_forward.1} parent=1 // pred_region
      %87 = dma.done [#allocation3], 128
    $region45: #{generator_forward.1} parent=1 // pred_fallthru
      _
    // Predicated region
    $region46: #{generator_forward.1} parent=1 // pred_check
      _
    $region47: #{generator_forward.1} parent=1 // pred_check_branch
      %89 = sbr.rel (0) target = $region49
    $region48: #{generator_forward.1} parent=1 // pred_region
      %90 = dma.done [#allocation6], 1024
    $region49: #{generator_forward.1} parent=1 // pred_fallthru
      _
    // Predicated region
    $region50: #{generator_forward.1} parent=1 // pred_check
      _
    $region51: #{generator_forward.1} parent=1 // pred_check_branch
      %92 = sbr.rel (0) target = $region53
    $region52: #{generator_forward.1} parent=1 // pred_region
      %93 = dma.done [#allocation6], 16384
    $region53: #{generator_forward.1} parent=1 // pred_fallthru
      _
    // Predicated region
    $region54: #{generator_forward.1} parent=1 // pred_check
      _
    $region55: #{generator_forward.1} parent=1 // pred_check_branch
      %95 = sbr.rel (0) target = $region57
    $region56: #{generator_forward.1} parent=1 // pred_region
      %96 = dma.done [#allocation9], 4096
    $region57: #{generator_forward.1} parent=1 // pred_fallthru
      _
    // Predicated region
    $region58: #{generator_forward.1} parent=1 // pred_check
      _
    $region59: #{generator_forward.1} parent=1 // pred_check_branch
      %98 = sbr.rel (0) target = $region61
    $region60: #{generator_forward.1} parent=1 // pred_region
      %99 = dma.done [#allocation9], 256
    $region61: #{generator_forward.1} parent=1 // pred_fallthru
      _
    %v101 = vld [vmem:[#allocation10] sm:$0xff]
    %v102 = vld [vmem:[#allocation10 + $0x8] sm:$0xff]
    %v103 = vld [vmem:[#allocation2] sm:$0xff]
    %v104 = vld [vmem:[#allocation5] sm:$0xff]
    %v105 = vld [vmem:[#allocation5 + $0x8] sm:$0xff]
    %v106 = vld [vmem:[#allocation5 + $0x10] sm:$0xff]
    %v107 = vld [vmem:[#allocation5 + $0x18] sm:$0xff]
    %v108 = vld [vmem:[#allocation5 + $0x20] sm:$0x3]
    %v109 = vld [vmem:[#allocation5 + $0x28] sm:$0x3]
    %v110 = vld [vmem:[#allocation5 + $0x30] sm:$0x3]
    %v111 = vld [vmem:[#allocation5 + $0x38] sm:$0x3]
    %v112 = vld [vmem:[%s1] sm:$0xff]
    %v113 = vld [vmem:[%s4] sm:$0x77]
    %v114 = vld [vmem:[%s4 + $0x8] sm:$0x77]
    %v117 = vcombine.high %v113, %v113
    %v118 = vcombine.high %v114, %v114
    %vm119 = vcmask 23552
    %v121 = vsel %vm119, %v112, 0
    %vm123 = vcmask 1042432
    %v124 = vsel %vm123, %v113, 0
    %v126 = vsel %vm123, %v117, 0
    %v128 = vsel %vm123, %v114, 0
    %v130 = vsel %vm123, %v118, 0
    %132 = vmatprep.subr.mxu0 %v126
    %133 = vmatpush1.msra.mxu0 %v124
    %134 = vmatprep.subr.mxu0 0.0
    %135 = vmatpush1.msra.mxu0 0.0
    %136 = vmatprep.subr.mxu0 0.0
    %137 = vmatpush1.msra.mxu0 0.0
    %138 = vmatprep.subr.mxu0 0.0
    %139 = vmatpush1.msra.mxu0 0.0
    %140 = vmatprep.subr.mxu0 0.0
    %141 = vmatpush1.msra.mxu0 0.0
    %142 = vmatprep.subr.mxu0 0.0
    %143 = vmatpush1.msra.mxu0 0.0
    %144 = vmatprep.subr.mxu0 0.0
    %145 = vmatpush1.msra.mxu0 0.0
    %146 = vmatprep.subr.mxu0 0.0
    %147 = vmatpush1.msra.mxu0 0.0
    %148 = vmatprep.subr.mxu0 0.0
    %149 = vmatpush1.msra.mxu0 0.0
    %150 = vmatprep.subr.mxu0 0.0
    %151 = vmatpush1.msra.mxu0 0.0
    %152 = vmatprep.subr.mxu0 0.0
    %153 = vmatpush1.msra.mxu0 0.0
    %154 = vmatprep.subr.mxu0 0.0
    %155 = vmatpush1.msra.mxu0 0.0
    %156 = vmatprep.subr.mxu0 0.0
    %157 = vmatpush1.msra.mxu0 0.0
    %158 = vmatprep.subr.mxu0 0.0
    %159 = vmatpush1.msra.mxu0 0.0
    %160 = vmatprep.subr.mxu0 0.0
    %161 = vmatpush1.msra.mxu0 0.0
    %162 = vmatprep.subr.mxu0 0.0
    %163 = vmatpush1.msra.mxu0 0.0
    %164 = vmatprep.subr.mxu0 0.0
    %165 = vmatpush1.msra.mxu0 0.0
    %166 = vmatprep.subr.mxu0 0.0
    %167 = vmatpush1.msra.mxu0 0.0
    %168 = vmatprep.subr.mxu0 0.0
    %169 = vmatpush1.msra.mxu0 0.0
    %170 = vmatprep.subr.mxu0 0.0
    %171 = vmatpush1.msra.mxu0 0.0
    %172 = vmatprep.subr.mxu0 0.0
    %173 = vmatpush1.msra.mxu0 0.0
    %174 = vmatprep.subr.mxu0 0.0
    %175 = vmatpush1.msra.mxu0 0.0
    %176 = vmatprep.subr.mxu0 0.0
    %177 = vmatpush1.msra.mxu0 0.0
    %178 = vmatprep.subr.mxu0 0.0
    %179 = vmatpush1.msra.mxu0 0.0
    %180 = vmatprep.subr.mxu0 0.0
    %181 = vmatpush1.msra.mxu0 0.0
    %182 = vmatprep.subr.mxu0 0.0
    %183 = vmatpush1.msra.mxu0 0.0
    %184 = vmatprep.subr.mxu0 0.0
    %185 = vmatpush1.msra.mxu0 0.0
    %186 = vmatprep.subr.mxu0 0.0
    %187 = vmatpush1.msra.mxu0 0.0
    %188 = vmatprep.subr.mxu0 0.0
    %189 = vmatpush1.msra.mxu0 0.0
    %190 = vmatprep.subr.mxu0 0.0
    %191 = vmatpush1.msra.mxu0 0.0
    %192 = vmatprep.subr.mxu0 0.0
    %193 = vmatpush1.msra.mxu0 0.0
    %194 = vmatprep.subr.mxu0 0.0
    %195 = vmatpush1.msra.mxu0 0.0
    %196 = vmatprep.mubr.f32.mxu0 0.0
    %197 = vmatmul.mubr.f32.gmra.mrb[0].mxu0 %v121
    %v198 = vpop.f32.mrb[0].mxu0
    %v199 = vadd.f32 0.0, %v198
    %v200 = vpop.f32.mrb[0].mxu0
    %v201 = vadd.f32 0.0, %v200
    %202 = vdwg.mxu0
    %203 = vmatprep.subr.mxu0 %v130
    %204 = vmatpush1.msra.mxu0 %v128
    %205 = vmatprep.subr.mxu0 0.0
    %206 = vmatpush1.msra.mxu0 0.0
    %207 = vmatprep.subr.mxu0 0.0
    %208 = vmatpush1.msra.mxu0 0.0
    %209 = vmatprep.subr.mxu0 0.0
    %210 = vmatpush1.msra.mxu0 0.0
    %211 = vmatprep.subr.mxu0 0.0
    %212 = vmatpush1.msra.mxu0 0.0
    %213 = vmatprep.subr.mxu0 0.0
    %214 = vmatpush1.msra.mxu0 0.0
    %215 = vmatprep.subr.mxu0 0.0
    %216 = vmatpush1.msra.mxu0 0.0
    %217 = vmatprep.subr.mxu0 0.0
    %218 = vmatpush1.msra.mxu0 0.0
    %219 = vmatprep.subr.mxu0 0.0
    %220 = vmatpush1.msra.mxu0 0.0
    %221 = vmatprep.subr.mxu0 0.0
    %222 = vmatpush1.msra.mxu0 0.0
    %223 = vmatprep.subr.mxu0 0.0
    %224 = vmatpush1.msra.mxu0 0.0
    %225 = vmatprep.subr.mxu0 0.0
    %226 = vmatpush1.msra.mxu0 0.0
    %227 = vmatprep.subr.mxu0 0.0
    %228 = vmatpush1.msra.mxu0 0.0
    %229 = vmatprep.subr.mxu0 0.0
    %230 = vmatpush1.msra.mxu0 0.0
    %231 = vmatprep.subr.mxu0 0.0
    %232 = vmatpush1.msra.mxu0 0.0
    %233 = vmatprep.subr.mxu0 0.0
    %234 = vmatpush1.msra.mxu0 0.0
    %235 = vmatprep.subr.mxu0 0.0
    %236 = vmatpush1.msra.mxu0 0.0
    %237 = vmatprep.subr.mxu0 0.0
    %238 = vmatpush1.msra.mxu0 0.0
    %239 = vmatprep.subr.mxu0 0.0
    %240 = vmatpush1.msra.mxu0 0.0
    %241 = vmatprep.subr.mxu0 0.0
    %242 = vmatpush1.msra.mxu0 0.0
    %243 = vmatprep.subr.mxu0 0.0
    %244 = vmatpush1.msra.mxu0 0.0
    %245 = vmatprep.subr.mxu0 0.0
    %246 = vmatpush1.msra.mxu0 0.0
    %247 = vmatprep.subr.mxu0 0.0
    %248 = vmatpush1.msra.mxu0 0.0
    %249 = vmatprep.subr.mxu0 0.0
    %250 = vmatpush1.msra.mxu0 0.0
    %251 = vmatprep.subr.mxu0 0.0
    %252 = vmatpush1.msra.mxu0 0.0
    %253 = vmatprep.subr.mxu0 0.0
    %254 = vmatpush1.msra.mxu0 0.0
    %255 = vmatprep.subr.mxu0 0.0
    %256 = vmatpush1.msra.mxu0 0.0
    %257 = vmatprep.subr.mxu0 0.0
    %258 = vmatpush1.msra.mxu0 0.0
    %259 = vmatprep.subr.mxu0 0.0
    %260 = vmatpush1.msra.mxu0 0.0
    %261 = vmatprep.subr.mxu0 0.0
    %262 = vmatpush1.msra.mxu0 0.0
    %263 = vmatprep.subr.mxu0 0.0
    %264 = vmatpush1.msra.mxu0 0.0
    %265 = vmatprep.subr.mxu0 0.0
    %266 = vmatpush1.msra.mxu0 0.0
    %267 = vmatprep.mubr.f32.mxu0 0.0
    %268 = vmatmul.mubr.f32.gmra.mrb[0].mxu0 %v121
    %v269 = vpop.f32.mrb[0].mxu0
    %v270 = vadd.f32 0.0, %v269
    %v271 = vpop.f32.mrb[0].mxu0
    %v272 = vadd.f32 0.0, %v271
    %273 = vdwg.mxu0
    %vm274 = vcmask 80896
    %v276 = vsel %vm274, %v103, 0
    %vm278 = vcmask 1041408
    %v280 = vsel %vm278, %v108, 0
    %v283 = vsel %vm278, %v109, 0
    %v286 = vsel %vm278, %v110, 0
    %v289 = vsel %vm278, %v111, 0
    %291 = vmatprep.subr.mxu0 %v105
    %292 = vmatpush1.msra.mxu0 %v104
    %293 = vmatprep.subr.mxu0 %v283
    %294 = vmatpush1.msra.mxu0 %v280
    %295 = vmatprep.subr.mxu0 0.0
    %296 = vmatpush1.msra.mxu0 0.0
    %297 = vmatprep.subr.mxu0 0.0
    %298 = vmatpush1.msra.mxu0 0.0
    %299 = vmatprep.subr.mxu0 0.0
    %300 = vmatpush1.msra.mxu0 0.0
    %301 = vmatprep.subr.mxu0 0.0
    %302 = vmatpush1.msra.mxu0 0.0
    %303 = vmatprep.subr.mxu0 0.0
    %304 = vmatpush1.msra.mxu0 0.0
    %305 = vmatprep.subr.mxu0 0.0
    %306 = vmatpush1.msra.mxu0 0.0
    %307 = vmatprep.subr.mxu0 0.0
    %308 = vmatpush1.msra.mxu0 0.0
    %309 = vmatprep.subr.mxu0 0.0
    %310 = vmatpush1.msra.mxu0 0.0
    %311 = vmatprep.subr.mxu0 0.0
    %312 = vmatpush1.msra.mxu0 0.0
    %313 = vmatprep.subr.mxu0 0.0
    %314 = vmatpush1.msra.mxu0 0.0
    %315 = vmatprep.subr.mxu0 0.0
    %316 = vmatpush1.msra.mxu0 0.0
    %317 = vmatprep.subr.mxu0 0.0
    %318 = vmatpush1.msra.mxu0 0.0
    %319 = vmatprep.subr.mxu0 0.0
    %320 = vmatpush1.msra.mxu0 0.0
    %321 = vmatprep.subr.mxu0 0.0
    %322 = vmatpush1.msra.mxu0 0.0
    %323 = vmatprep.subr.mxu0 0.0
    %324 = vmatpush1.msra.mxu0 0.0
    %325 = vmatprep.subr.mxu0 0.0
    %326 = vmatpush1.msra.mxu0 0.0
    %327 = vmatprep.subr.mxu0 0.0
    %328 = vmatpush1.msra.mxu0 0.0
    %329 = vmatprep.subr.mxu0 0.0
    %330 = vmatpush1.msra.mxu0 0.0
    %331 = vmatprep.subr.mxu0 0.0
    %332 = vmatpush1.msra.mxu0 0.0
    %333 = vmatprep.subr.mxu0 0.0
    %334 = vmatpush1.msra.mxu0 0.0
    %335 = vmatprep.subr.mxu0 0.0
    %336 = vmatpush1.msra.mxu0 0.0
    %337 = vmatprep.subr.mxu0 0.0
    %338 = vmatpush1.msra.mxu0 0.0
    %339 = vmatprep.subr.mxu0 0.0
    %340 = vmatpush1.msra.mxu0 0.0
    %341 = vmatprep.subr.mxu0 0.0
    %342 = vmatpush1.msra.mxu0 0.0
    %343 = vmatprep.subr.mxu0 0.0
    %344 = vmatpush1.msra.mxu0 0.0
    %345 = vmatprep.subr.mxu0 0.0
    %346 = vmatpush1.msra.mxu0 0.0
    %347 = vmatprep.subr.mxu0 0.0
    %348 = vmatpush1.msra.mxu0 0.0
    %349 = vmatprep.subr.mxu0 0.0
    %350 = vmatpush1.msra.mxu0 0.0
    %351 = vmatprep.subr.mxu0 0.0
    %352 = vmatpush1.msra.mxu0 0.0
    %353 = vmatprep.subr.mxu0 0.0
    %354 = vmatpush1.msra.mxu0 0.0
    %355 = vmatprep.mubr.f32.mxu0 0.0
    %356 = vmatmul.mubr.f32.gmra.mrb[0].mxu0 %v276
    %v357 = vpop.f32.mrb[0].mxu0
    %v358 = vadd.f32 %v199, %v357
    %v359 = vpop.f32.mrb[0].mxu0
    %v360 = vadd.f32 %v201, %v359
    %361 = vdwg.mxu0
    %362 = vmatprep.subr.mxu0 %v107
    %363 = vmatpush1.msra.mxu0 %v106
    %364 = vmatprep.subr.mxu0 %v289
    %365 = vmatpush1.msra.mxu0 %v286
    %366 = vmatprep.subr.mxu0 0.0
    %367 = vmatpush1.msra.mxu0 0.0
    %368 = vmatprep.subr.mxu0 0.0
    %369 = vmatpush1.msra.mxu0 0.0
    %370 = vmatprep.subr.mxu0 0.0
    %371 = vmatpush1.msra.mxu0 0.0
    %372 = vmatprep.subr.mxu0 0.0
    %373 = vmatpush1.msra.mxu0 0.0
    %374 = vmatprep.subr.mxu0 0.0
    %375 = vmatpush1.msra.mxu0 0.0
    %376 = vmatprep.subr.mxu0 0.0
    %377 = vmatpush1.msra.mxu0 0.0
    %378 = vmatprep.subr.mxu0 0.0
    %379 = vmatpush1.msra.mxu0 0.0
    %380 = vmatprep.subr.mxu0 0.0
    %381 = vmatpush1.msra.mxu0 0.0
    %382 = vmatprep.subr.mxu0 0.0
    %383 = vmatpush1.msra.mxu0 0.0
    %384 = vmatprep.subr.mxu0 0.0
    %385 = vmatpush1.msra.mxu0 0.0
    %386 = vmatprep.subr.mxu0 0.0
    %387 = vmatpush1.msra.mxu0 0.0
    %388 = vmatprep.subr.mxu0 0.0
    %389 = vmatpush1.msra.mxu0 0.0
    %390 = vmatprep.subr.mxu0 0.0
    %391 = vmatpush1.msra.mxu0 0.0
    %392 = vmatprep.subr.mxu0 0.0
    %393 = vmatpush1.msra.mxu0 0.0
    %394 = vmatprep.subr.mxu0 0.0
    %395 = vmatpush1.msra.mxu0 0.0
    %396 = vmatprep.subr.mxu0 0.0
    %397 = vmatpush1.msra.mxu0 0.0
    %398 = vmatprep.subr.mxu0 0.0
    %399 = vmatpush1.msra.mxu0 0.0
    %400 = vmatprep.subr.mxu0 0.0
    %401 = vmatpush1.msra.mxu0 0.0
    %402 = vmatprep.subr.mxu0 0.0
    %403 = vmatpush1.msra.mxu0 0.0
    %404 = vmatprep.subr.mxu0 0.0
    %405 = vmatpush1.msra.mxu0 0.0
    %406 = vmatprep.subr.mxu0 0.0
    %407 = vmatpush1.msra.mxu0 0.0
    %408 = vmatprep.subr.mxu0 0.0
    %409 = vmatpush1.msra.mxu0 0.0
    %410 = vmatprep.subr.mxu0 0.0
    %411 = vmatpush1.msra.mxu0 0.0
    %412 = vmatprep.subr.mxu0 0.0
    %413 = vmatpush1.msra.mxu0 0.0
    %414 = vmatprep.subr.mxu0 0.0
    %415 = vmatpush1.msra.mxu0 0.0
    %416 = vmatprep.subr.mxu0 0.0
    %417 = vmatpush1.msra.mxu0 0.0
    %418 = vmatprep.subr.mxu0 0.0
    %419 = vmatpush1.msra.mxu0 0.0
    %420 = vmatprep.subr.mxu0 0.0
    %421 = vmatpush1.msra.mxu0 0.0
    %422 = vmatprep.subr.mxu0 0.0
    %423 = vmatpush1.msra.mxu0 0.0
    %424 = vmatprep.subr.mxu0 0.0
    %425 = vmatpush1.msra.mxu0 0.0
    %426 = vmatprep.mubr.f32.mxu0 0.0
    %427 = vmatmul.mubr.f32.gmra.mrb[0].mxu0 %v276
    %v428 = vpop.f32.mrb[0].mxu0
    %v429 = vadd.f32 %v270, %v428
    %v430 = vpop.f32.mrb[0].mxu0
    %v431 = vadd.f32 %v272, %v430
    %432 = vdwg.mxu0
    %v433 = vld [vmem:[%s2] sm:$0xff]
    %v434 = vld [vmem:[%s5] sm:$0xff]
    %v435 = vld [vmem:[%s5 + $0x8] sm:$0xff]
    %v438 = vcombine.high %v434, %v434
    %v439 = vcombine.high %v435, %v435
    %vm440 = vcmask 31744
    %v442 = vsel %vm440, %v433, 0
    %vm444 = vcmask 1043456
    %v445 = vsel %vm444, %v434, 0
    %v447 = vsel %vm444, %v438, 0
    %v449 = vsel %vm444, %v435, 0
    %v451 = vsel %vm444, %v439, 0
    %453 = vmatprep.subr.mxu0 %v447
    %454 = vmatpush1.msra.mxu0 %v445
    %455 = vmatprep.subr.mxu0 0.0
    %456 = vmatpush1.msra.mxu0 0.0
    %457 = vmatprep.subr.mxu0 0.0
    %458 = vmatpush1.msra.mxu0 0.0
    %459 = vmatprep.subr.mxu0 0.0
    %460 = vmatpush1.msra.mxu0 0.0
    %461 = vmatprep.subr.mxu0 0.0
    %462 = vmatpush1.msra.mxu0 0.0
    %463 = vmatprep.subr.mxu0 0.0
    %464 = vmatpush1.msra.mxu0 0.0
    %465 = vmatprep.subr.mxu0 0.0
    %466 = vmatpush1.msra.mxu0 0.0
    %467 = vmatprep.subr.mxu0 0.0
    %468 = vmatpush1.msra.mxu0 0.0
    %469 = vmatprep.subr.mxu0 0.0
    %470 = vmatpush1.msra.mxu0 0.0
    %471 = vmatprep.subr.mxu0 0.0
    %472 = vmatpush1.msra.mxu0 0.0
    %473 = vmatprep.subr.mxu0 0.0
    %474 = vmatpush1.msra.mxu0 0.0
    %475 = vmatprep.subr.mxu0 0.0
    %476 = vmatpush1.msra.mxu0 0.0
    %477 = vmatprep.subr.mxu0 0.0
    %478 = vmatpush1.msra.mxu0 0.0
    %479 = vmatprep.subr.mxu0 0.0
    %480 = vmatpush1.msra.mxu0 0.0
    %481 = vmatprep.subr.mxu0 0.0
    %482 = vmatpush1.msra.mxu0 0.0
    %483 = vmatprep.subr.mxu0 0.0
    %484 = vmatpush1.msra.mxu0 0.0
    %485 = vmatprep.subr.mxu0 0.0
    %486 = vmatpush1.msra.mxu0 0.0
    %487 = vmatprep.subr.mxu0 0.0
    %488 = vmatpush1.msra.mxu0 0.0
    %489 = vmatprep.subr.mxu0 0.0
    %490 = vmatpush1.msra.mxu0 0.0
    %491 = vmatprep.subr.mxu0 0.0
    %492 = vmatpush1.msra.mxu0 0.0
    %493 = vmatprep.subr.mxu0 0.0
    %494 = vmatpush1.msra.mxu0 0.0
    %495 = vmatprep.subr.mxu0 0.0
    %496 = vmatpush1.msra.mxu0 0.0
    %497 = vmatprep.subr.mxu0 0.0
    %498 = vmatpush1.msra.mxu0 0.0
    %499 = vmatprep.subr.mxu0 0.0
    %500 = vmatpush1.msra.mxu0 0.0
    %501 = vmatprep.subr.mxu0 0.0
    %502 = vmatpush1.msra.mxu0 0.0
    %503 = vmatprep.subr.mxu0 0.0
    %504 = vmatpush1.msra.mxu0 0.0
    %505 = vmatprep.subr.mxu0 0.0
    %506 = vmatpush1.msra.mxu0 0.0
    %507 = vmatprep.subr.mxu0 0.0
    %508 = vmatpush1.msra.mxu0 0.0
    %509 = vmatprep.subr.mxu0 0.0
    %510 = vmatpush1.msra.mxu0 0.0
    %511 = vmatprep.subr.mxu0 0.0
    %512 = vmatpush1.msra.mxu0 0.0
    %513 = vmatprep.subr.mxu0 0.0
    %514 = vmatpush1.msra.mxu0 0.0
    %515 = vmatprep.subr.mxu0 0.0
    %516 = vmatpush1.msra.mxu0 0.0
    %517 = vmatprep.mubr.f32.mxu0 0.0
    %518 = vmatmul.mubr.f32.gmra.mrb[0].mxu0 %v442
    %v519 = vpop.f32.mrb[0].mxu0
    %v520 = vadd.f32 0.0, %v519
    %v521 = vpop.f32.mrb[0].mxu0
    %v522 = vadd.f32 0.0, %v521
    %523 = vdwg.mxu0
    %524 = vmatprep.subr.mxu0 %v451
    %525 = vmatpush1.msra.mxu0 %v449
    %526 = vmatprep.subr.mxu0 0.0
    %527 = vmatpush1.msra.mxu0 0.0
    %528 = vmatprep.subr.mxu0 0.0
    %529 = vmatpush1.msra.mxu0 0.0
    %530 = vmatprep.subr.mxu0 0.0
    %531 = vmatpush1.msra.mxu0 0.0
    %532 = vmatprep.subr.mxu0 0.0
    %533 = vmatpush1.msra.mxu0 0.0
    %534 = vmatprep.subr.mxu0 0.0
    %535 = vmatpush1.msra.mxu0 0.0
    %536 = vmatprep.subr.mxu0 0.0
    %537 = vmatpush1.msra.mxu0 0.0
    %538 = vmatprep.subr.mxu0 0.0
    %539 = vmatpush1.msra.mxu0 0.0
    %540 = vmatprep.subr.mxu0 0.0
    %541 = vmatpush1.msra.mxu0 0.0
    %542 = vmatprep.subr.mxu0 0.0
    %543 = vmatpush1.msra.mxu0 0.0
    %544 = vmatprep.subr.mxu0 0.0
    %545 = vmatpush1.msra.mxu0 0.0
    %546 = vmatprep.subr.mxu0 0.0
    %547 = vmatpush1.msra.mxu0 0.0
    %548 = vmatprep.subr.mxu0 0.0
    %549 = vmatpush1.msra.mxu0 0.0
    %550 = vmatprep.subr.mxu0 0.0
    %551 = vmatpush1.msra.mxu0 0.0
    %552 = vmatprep.subr.mxu0 0.0
    %553 = vmatpush1.msra.mxu0 0.0
    %554 = vmatprep.subr.mxu0 0.0
    %555 = vmatpush1.msra.mxu0 0.0
    %556 = vmatprep.subr.mxu0 0.0
    %557 = vmatpush1.msra.mxu0 0.0
    %558 = vmatprep.subr.mxu0 0.0
    %559 = vmatpush1.msra.mxu0 0.0
    %560 = vmatprep.subr.mxu0 0.0
    %561 = vmatpush1.msra.mxu0 0.0
    %562 = vmatprep.subr.mxu0 0.0
    %563 = vmatpush1.msra.mxu0 0.0
    %564 = vmatprep.subr.mxu0 0.0
    %565 = vmatpush1.msra.mxu0 0.0
    %566 = vmatprep.subr.mxu0 0.0
    %567 = vmatpush1.msra.mxu0 0.0
    %568 = vmatprep.subr.mxu0 0.0
    %569 = vmatpush1.msra.mxu0 0.0
    %570 = vmatprep.subr.mxu0 0.0
    %571 = vmatpush1.msra.mxu0 0.0
    %572 = vmatprep.subr.mxu0 0.0
    %573 = vmatpush1.msra.mxu0 0.0
    %574 = vmatprep.subr.mxu0 0.0
    %575 = vmatpush1.msra.mxu0 0.0
    %576 = vmatprep.subr.mxu0 0.0
    %577 = vmatpush1.msra.mxu0 0.0
    %578 = vmatprep.subr.mxu0 0.0
    %579 = vmatpush1.msra.mxu0 0.0
    %580 = vmatprep.subr.mxu0 0.0
    %581 = vmatpush1.msra.mxu0 0.0
    %582 = vmatprep.subr.mxu0 0.0
    %583 = vmatpush1.msra.mxu0 0.0
    %584 = vmatprep.subr.mxu0 0.0
    %585 = vmatpush1.msra.mxu0 0.0
    %586 = vmatprep.subr.mxu0 0.0
    %587 = vmatpush1.msra.mxu0 0.0
    %588 = vmatprep.mubr.f32.mxu0 0.0
    %589 = vmatmul.mubr.f32.gmra.mrb[0].mxu0 %v442
    %v590 = vpop.f32.mrb[0].mxu0
    %v591 = vadd.f32 0.0, %v590
    %v592 = vpop.f32.mrb[0].mxu0
    %v593 = vadd.f32 0.0, %v592
    %594 = vdwg.mxu0
    %v595 = vadd.f32 %v358, %v520
    %v596 = vadd.f32 %v360, %v522
    %v597 = vadd.f32 %v429, %v591
    %v598 = vadd.f32 %v431, %v593
    %v599 = vrot.slane %v595, 4
    %v600 = vadd.f32 %v595, %v599
    %v601 = vrot.slane %v600, 2
    %v602 = vadd.f32 %v600, %v601
    %v603 = vrot.slane %v602, 1
    %v604 = vadd.f32 %v602, %v603
    %v605 = vrot.slane %v596, 4
    %v606 = vadd.f32 %v596, %v605
    %v607 = vrot.slane %v606, 2
    %v608 = vadd.f32 %v606, %v607
    %v609 = vrot.slane %v608, 1
    %v610 = vadd.f32 %v608, %v609
    %v611 = vrot.slane %v597, 4
    %v612 = vadd.f32 %v597, %v611
    %v613 = vrot.slane %v612, 2
    %v614 = vadd.f32 %v612, %v613
    %v615 = vrot.slane %v614, 1
    %v616 = vadd.f32 %v614, %v615
    %v617 = vrot.slane %v598, 4
    %v618 = vadd.f32 %v598, %v617
    %v619 = vrot.slane %v618, 2
    %v620 = vadd.f32 %v618, %v619
    %v621 = vrot.slane %v620, 1
    %v622 = vadd.f32 %v620, %v621
    %v623 = vmul.f32 %v604, 0.125
    %v624 = vmul.f32 %v610, 0.125
    %v625 = vmul.f32 %v616, 0.125
    %v626 = vmul.f32 %v622, 0.125
    %v627 = vmul.f32 %v595, %v595
    %v628 = vmul.f32 %v596, %v596
    %v629 = vmul.f32 %v597, %v597
    %v630 = vmul.f32 %v598, %v598
    %v631 = vrot.slane %v627, 4
    %v632 = vadd.f32 %v627, %v631
    %v633 = vrot.slane %v632, 2
    %v634 = vadd.f32 %v632, %v633
    %v635 = vrot.slane %v634, 1
    %v636 = vadd.f32 %v634, %v635
    %v637 = vrot.slane %v628, 4
    %v638 = vadd.f32 %v628, %v637
    %v639 = vrot.slane %v638, 2
    %v640 = vadd.f32 %v638, %v639
    %v641 = vrot.slane %v640, 1
    %v642 = vadd.f32 %v640, %v641
    %v643 = vrot.slane %v629, 4
    %v644 = vadd.f32 %v629, %v643
    %v645 = vrot.slane %v644, 2
    %v646 = vadd.f32 %v644, %v645
    %v647 = vrot.slane %v646, 1
    %v648 = vadd.f32 %v646, %v647
    %v649 = vrot.slane %v630, 4
    %v650 = vadd.f32 %v630, %v649
    %v651 = vrot.slane %v650, 2
    %v652 = vadd.f32 %v650, %v651
    %v653 = vrot.slane %v652, 1
    %v654 = vadd.f32 %v652, %v653
    %v655 = vmul.f32 %v636, 0.125
    %v656 = vmul.f32 %v642, 0.125
    %v657 = vmul.f32 %v648, 0.125
    %v658 = vmul.f32 %v654, 0.125
    %v659 = vmul.f32 %v623, %v623
    %v660 = vmul.f32 %v624, %v624
    %v661 = vmul.f32 %v625, %v625
    %v662 = vmul.f32 %v626, %v626
    %v663 = vsub.f32 %v655, %v659
    %v664 = vsub.f32 %v656, %v660
    %v665 = vsub.f32 %v657, %v661
    %v666 = vsub.f32 %v658, %v662
    %v667 = vmax.f32 %v663, 0.0
    %v668 = vmax.f32 %v664, 0.0
    %v669 = vmax.f32 %v665, 0.0
    %v670 = vmax.f32 %v666, 0.0
    %v671 = vadd.f32 %v667, 1e-05
    %v672 = vadd.f32 %v668, 1e-05
    %v673 = vadd.f32 %v669, 1e-05
    %v674 = vadd.f32 %v670, 1e-05
    %v675 = vrsqrt.pop %v671
    %v676 = vrsqrt.pop %v672
    %v677 = vrsqrt.pop %v673
    %v678 = vrsqrt.pop %v674
    %v683 = vcombine.low %v675, %v676
    %v684 = vcombine.low %v677, %v678
    %v687 = vmul.f32 %v101, %v683
    %v688 = vmul.f32 %v102, %v684
    %v691 = vlaneseq
    %v692 = vshrl.u32 %v691, 7
    %v693 = vsub.s32 0, %v692
    %v694 = vrot.slane %v687, %v693
    %v695 = vlaneseq
    %v696 = vshrl.u32 %v695, 7
    %v697 = vsub.s32 4, %v696
    %v698 = vrot.slane %v687, %v697
    %v699 = vlaneseq
    %v700 = vshrl.u32 %v699, 7
    %v701 = vsub.s32 0, %v700
    %v702 = vrot.slane %v688, %v701
    %v703 = vlaneseq
    %v704 = vshrl.u32 %v703, 7
    %v705 = vsub.s32 4, %v704
    %v706 = vrot.slane %v688, %v705
    %v711 = vmul.f32 %v623, %v694
    %v712 = vmul.f32 %v624, %v698
    %v713 = vmul.f32 %v625, %v702
    %v714 = vmul.f32 %v626, %v706
    %v719 = vcombine.low %v711, %v712
    %v720 = vcombine.low %v713, %v714
    %v721 = vrot.slane %v719, 7
    %v722 = vrot.slane %v720, 7
    %v725 = vsub.f32 %v101, %v721
    %v726 = vsub.f32 %v102, %v722
    %v727 = vlaneseq
    %v728 = vshrl.u32 %v727, 7
    %v729 = vsub.s32 0, %v728
    %v730 = vrot.slane %v694, %v729
    %v731 = vlaneseq
    %v732 = vshrl.u32 %v731, 7
    %v733 = vsub.s32 0, %v732
    %v734 = vrot.slane %v698, %v733
    %v735 = vlaneseq
    %v736 = vshrl.u32 %v735, 7
    %v737 = vsub.s32 0, %v736
    %v738 = vrot.slane %v702, %v737
    %v739 = vlaneseq
    %v740 = vshrl.u32 %v739, 7
    %v741 = vsub.s32 0, %v740
    %v742 = vrot.slane %v706, %v741
    %v743 = vmul.f32 %v595, %v730
    %v744 = vmul.f32 %v596, %v734
    %v745 = vmul.f32 %v597, %v738
    %v746 = vmul.f32 %v598, %v742
    %v749 = vlaneseq
    %v750 = vshrl.u32 %v749, 7
    %v751 = vsub.s32 1, %v750
    %v752 = vrot.slane %v725, %v751
    %v753 = vlaneseq
    %v754 = vshrl.u32 %v753, 7
    %v755 = vsub.s32 5, %v754
    %v756 = vrot.slane %v725, %v755
    %v757 = vlaneseq
    %v758 = vshrl.u32 %v757, 7
    %v759 = vsub.s32 1, %v758
    %v760 = vrot.slane %v726, %v759
    %v761 = vlaneseq
    %v762 = vshrl.u32 %v761, 7
    %v763 = vsub.s32 5, %v762
    %v764 = vrot.slane %v726, %v763
    %v769 = vlaneseq
    %v770 = vshrl.u32 %v769, 7
    %v771 = vsub.s32 1, %v770
    %v772 = vrot.slane %v752, %v771
    %v773 = vlaneseq
    %v774 = vshrl.u32 %v773, 7
    %v775 = vsub.s32 1, %v774
    %v776 = vrot.slane %v756, %v775
    %v777 = vlaneseq
    %v778 = vshrl.u32 %v777, 7
    %v779 = vsub.s32 1, %v778
    %v780 = vrot.slane %v760, %v779
    %v781 = vlaneseq
    %v782 = vshrl.u32 %v781, 7
    %v783 = vsub.s32 1, %v782
    %v784 = vrot.slane %v764, %v783
    %v785 = vadd.f32 %v743, %v772
    %v786 = vadd.f32 %v744, %v776
    %v787 = vadd.f32 %v745, %v780
    %v788 = vadd.f32 %v746, %v784
    %v789 = vmax.f32 %v785, 0.0
    %v790 = vmax.f32 %v786, 0.0
    %v791 = vmax.f32 %v787, 0.0
    %v792 = vmax.f32 %v788, 0.0
    %v793 = vpack.c.bf16 %v789, %v789
    %v794 = vpack.c.bf16 %v790, %v790
    %v795 = vpack.c.bf16 %v791, %v791
    %v796 = vpack.c.bf16 %v792, %v792
    %v797 = vld [vmem:[#allocation7] sm:$0xff]
    %v798 = vld [vmem:[#allocation7 + $0x8] sm:$0xff]
    %v799 = vld [vmem:[#allocation7 + $0x10] sm:$0xff]
    %v800 = vld [vmem:[#allocation7 + $0x18] sm:$0xff]
    %v801 = vld [vmem:[#allocation7 + $0x20] sm:$0xff]
    %v802 = vld [vmem:[#allocation7 + $0x28] sm:$0xff]
    %v803 = vld [vmem:[#allocation7 + $0x30] sm:$0xff]
    %v804 = vld [vmem:[#allocation7 + $0x38] sm:$0xff]
    %v805 = vld [vmem:[#allocation7 + $0x40] sm:$0xff]
    %v806 = vld [vmem:[#allocation7 + $0x48] sm:$0xff]
    %v807 = vld [vmem:[#allocation7 + $0x50] sm:$0xff]
    %v808 = vld [vmem:[#allocation7 + $0x58] sm:$0xff]
    %v809 = vld [vmem:[#allocation7 + $0x60] sm:$0xff]
    %v810 = vld [vmem:[#allocation7 + $0x68] sm:$0xff]
    %v811 = vld [vmem:[#allocation7 + $0x70] sm:$0xff]
    %v812 = vld [vmem:[#allocation7 + $0x78] sm:$0xff]
    %v813 = vld [vmem:[#allocation7 + $0x80] sm:$0xff]
    %v814 = vld [vmem:[#allocation7 + $0x88] sm:$0xff]
    %v815 = vld [vmem:[#allocation7 + $0x90] sm:$0xff]
    %v816 = vld [vmem:[#allocation7 + $0x98] sm:$0xff]
    %v817 = vld [vmem:[#allocation7 + $0xa0] sm:$0xff]
    %v818 = vld [vmem:[#allocation7 + $0xa8] sm:$0xff]
    %v819 = vld [vmem:[#allocation7 + $0xb0] sm:$0xff]
    %v820 = vld [vmem:[#allocation7 + $0xb8] sm:$0xff]
    %v821 = vld [vmem:[#allocation7 + $0xc0] sm:$0xff]
    %v822 = vld [vmem:[#allocation7 + $0xc8] sm:$0xff]
    %v823 = vld [vmem:[#allocation7 + $0xd0] sm:$0xff]
    %v824 = vld [vmem:[#allocation7 + $0xd8] sm:$0xff]
    %v825 = vld [vmem:[#allocation7 + $0xe0] sm:$0xff]
    %v826 = vld [vmem:[#allocation7 + $0xe8] sm:$0xff]
    %v827 = vld [vmem:[#allocation7 + $0xf0] sm:$0xff]
    %v828 = vld [vmem:[#allocation7 + $0xf8] sm:$0xff]
    %v829 = vld [vmem:[#allocation7 + $0x100] sm:$0xff]
    %v830 = vld [vmem:[#allocation7 + $0x108] sm:$0xff]
    %v831 = vld [vmem:[#allocation7 + $0x110] sm:$0xff]
    %v832 = vld [vmem:[#allocation7 + $0x118] sm:$0xff]
    %v833 = vld [vmem:[#allocation7 + $0x120] sm:$0xff]
    %v834 = vld [vmem:[#allocation7 + $0x128] sm:$0xff]
    %v835 = vld [vmem:[#allocation7 + $0x130] sm:$0xff]
    %v836 = vld [vmem:[#allocation7 + $0x138] sm:$0xff]
    %v837 = vld [vmem:[#allocation7 + $0x140] sm:$0xff]
    %v838 = vld [vmem:[#allocation7 + $0x148] sm:$0xff]
    %v839 = vld [vmem:[#allocation7 + $0x150] sm:$0xff]
    %v840 = vld [vmem:[#allocation7 + $0x158] sm:$0xff]
    %v841 = vld [vmem:[#allocation7 + $0x160] sm:$0xff]
    %v842 = vld [vmem:[#allocation7 + $0x168] sm:$0xff]
    %v843 = vld [vmem:[#allocation7 + $0x170] sm:$0xff]
    %v844 = vld [vmem:[#allocation7 + $0x178] sm:$0xff]
    %v845 = vld [vmem:[#allocation7 + $0x180] sm:$0xff]
    %v846 = vld [vmem:[#allocation7 + $0x188] sm:$0xff]
    %v847 = vld [vmem:[#allocation7 + $0x190] sm:$0xff]
    %v848 = vld [vmem:[#allocation7 + $0x198] sm:$0xff]
    %v849 = vld [vmem:[#allocation7 + $0x1a0] sm:$0xff]
    %v850 = vld [vmem:[#allocation7 + $0x1a8] sm:$0xff]
    %v851 = vld [vmem:[#allocation7 + $0x1b0] sm:$0xff]
    %v852 = vld [vmem:[#allocation7 + $0x1b8] sm:$0xff]
    %v853 = vld [vmem:[#allocation7 + $0x1c0] sm:$0xff]
    %v854 = vld [vmem:[#allocation7 + $0x1c8] sm:$0xff]
    %v855 = vld [vmem:[#allocation7 + $0x1d0] sm:$0xff]
    %v856 = vld [vmem:[#allocation7 + $0x1d8] sm:$0xff]
    %v857 = vld [vmem:[#allocation7 + $0x1e0] sm:$0xff]
    %v858 = vld [vmem:[#allocation7 + $0x1e8] sm:$0xff]
    %v859 = vld [vmem:[#allocation7 + $0x1f0] sm:$0xff]
    %v860 = vld [vmem:[#allocation7 + $0x1f8] sm:$0xff]
    %v861 = vld [vmem:[#allocation7 + $0x200] sm:$0xff]
    %v862 = vld [vmem:[#allocation7 + $0x208] sm:$0xff]
    %v863 = vld [vmem:[#allocation7 + $0x210] sm:$0xff]
    %v864 = vld [vmem:[#allocation7 + $0x218] sm:$0xff]
    %v865 = vld [vmem:[#allocation7 + $0x220] sm:$0xff]
    %v866 = vld [vmem:[#allocation7 + $0x228] sm:$0xff]
    %v867 = vld [vmem:[#allocation7 + $0x230] sm:$0xff]
    %v868 = vld [vmem:[#allocation7 + $0x238] sm:$0xff]
    %v869 = vld [vmem:[#allocation7 + $0x240] sm:$0xff]
    %v870 = vld [vmem:[#allocation7 + $0x248] sm:$0xff]
    %v871 = vld [vmem:[#allocation7 + $0x250] sm:$0xff]
    %v872 = vld [vmem:[#allocation7 + $0x258] sm:$0xff]
    %v873 = vld [vmem:[#allocation7 + $0x260] sm:$0xff]
    %v874 = vld [vmem:[#allocation7 + $0x268] sm:$0xff]
    %v875 = vld [vmem:[#allocation7 + $0x270] sm:$0xff]
    %v876 = vld [vmem:[#allocation7 + $0x278] sm:$0xff]
    %v877 = vld [vmem:[#allocation7 + $0x280] sm:$0xff]
    %v878 = vld [vmem:[#allocation7 + $0x288] sm:$0xff]
    %v879 = vld [vmem:[#allocation7 + $0x290] sm:$0xff]
    %v880 = vld [vmem:[#allocation7 + $0x298] sm:$0xff]
    %v881 = vld [vmem:[#allocation7 + $0x2a0] sm:$0xff]
    %v882 = vld [vmem:[#allocation7 + $0x2a8] sm:$0xff]
    %v883 = vld [vmem:[#allocation7 + $0x2b0] sm:$0xff]
    %v884 = vld [vmem:[#allocation7 + $0x2b8] sm:$0xff]
    %v885 = vld [vmem:[#allocation7 + $0x2c0] sm:$0xff]
    %v886 = vld [vmem:[#allocation7 + $0x2c8] sm:$0xff]
    %v887 = vld [vmem:[#allocation7 + $0x2d0] sm:$0xff]
    %v888 = vld [vmem:[#allocation7 + $0x2d8] sm:$0xff]
    %v889 = vld [vmem:[#allocation7 + $0x2e0] sm:$0xff]
    %v890 = vld [vmem:[#allocation7 + $0x2e8] sm:$0xff]
    %v891 = vld [vmem:[#allocation7 + $0x2f0] sm:$0xff]
    %v892 = vld [vmem:[#allocation7 + $0x2f8] sm:$0xff]
    %v893 = vld [vmem:[#allocation7 + $0x300] sm:$0xff]
    %v894 = vld [vmem:[#allocation7 + $0x308] sm:$0xff]
    %v895 = vld [vmem:[#allocation7 + $0x310] sm:$0xff]
    %v896 = vld [vmem:[#allocation7 + $0x318] sm:$0xff]
    %v897 = vld [vmem:[#allocation7 + $0x320] sm:$0xff]
    %v898 = vld [vmem:[#allocation7 + $0x328] sm:$0xff]
    %v899 = vld [vmem:[#allocation7 + $0x330] sm:$0xff]
    %v900 = vld [vmem:[#allocation7 + $0x338] sm:$0xff]
    %v901 = vld [vmem:[#allocation7 + $0x340] sm:$0xff]
    %v902 = vld [vmem:[#allocation7 + $0x348] sm:$0xff]
    %v903 = vld [vmem:[#allocation7 + $0x350] sm:$0xff]
    %v904 = vld [vmem:[#allocation7 + $0x358] sm:$0xff]
    %v905 = vld [vmem:[#allocation7 + $0x360] sm:$0xff]
    %v906 = vld [vmem:[#allocation7 + $0x368] sm:$0xff]
    %v907 = vld [vmem:[#allocation7 + $0x370] sm:$0xff]
    %v908 = vld [vmem:[#allocation7 + $0x378] sm:$0xff]
    %v909 = vld [vmem:[#allocation7 + $0x380] sm:$0xff]
    %v910 = vld [vmem:[#allocation7 + $0x388] sm:$0xff]
    %v911 = vld [vmem:[#allocation7 + $0x390] sm:$0xff]
    %v912 = vld [vmem:[#allocation7 + $0x398] sm:$0xff]
    %v913 = vld [vmem:[#allocation7 + $0x3a0] sm:$0xff]
    %v914 = vld [vmem:[#allocation7 + $0x3a8] sm:$0xff]
    %v915 = vld [vmem:[#allocation7 + $0x3b0] sm:$0xff]
    %v916 = vld [vmem:[#allocation7 + $0x3b8] sm:$0xff]
    %v917 = vld [vmem:[#allocation7 + $0x3c0] sm:$0xff]
    %v918 = vld [vmem:[#allocation7 + $0x3c8] sm:$0xff]
    %v919 = vld [vmem:[#allocation7 + $0x3d0] sm:$0xff]
    %v920 = vld [vmem:[#allocation7 + $0x3d8] sm:$0xff]
    %v921 = vld [vmem:[#allocation7 + $0x3e0] sm:$0xff]
    %v922 = vld [vmem:[#allocation7 + $0x3e8] sm:$0xff]
    %v923 = vld [vmem:[#allocation7 + $0x3f0] sm:$0xff]
    %v924 = vld [vmem:[#allocation7 + $0x3f8] sm:$0xff]
    %v1053 = vunpack.c.l.b16 %v797
    %v1054 = vunpack.c.h.b16 %v797
    %v1055 = vunpack.c.l.b16 %v798
    %v1056 = vunpack.c.h.b16 %v798
    %v1057 = vunpack.c.l.b16 %v799
    %v1058 = vunpack.c.h.b16 %v799
    %v1059 = vunpack.c.l.b16 %v800
    %v1060 = vunpack.c.h.b16 %v800
    %v1061 = vunpack.c.l.b16 %v801
    %v1062 = vunpack.c.h.b16 %v801
    %v1063 = vunpack.c.l.b16 %v802
    %v1064 = vunpack.c.h.b16 %v802
    %v1065 = vunpack.c.l.b16 %v803
    %v1066 = vunpack.c.h.b16 %v803
    %v1067 = vunpack.c.l.b16 %v804
    %v1068 = vunpack.c.h.b16 %v804
    %v1069 = vunpack.c.l.b16 %v805
    %v1070 = vunpack.c.h.b16 %v805
    %v1071 = vunpack.c.l.b16 %v806
    %v1072 = vunpack.c.h.b16 %v806
    %v1073 = vunpack.c.l.b16 %v807
    %v1074 = vunpack.c.h.b16 %v807
    %v1075 = vunpack.c.l.b16 %v808
    %v1076 = vunpack.c.h.b16 %v808
    %v1077 = vunpack.c.l.b16 %v809
    %v1078 = vunpack.c.h.b16 %v809
    %v1079 = vunpack.c.l.b16 %v810
    %v1080 = vunpack.c.h.b16 %v810
    %v1081 = vunpack.c.l.b16 %v811
    %v1082 = vunpack.c.h.b16 %v811
    %v1083 = vunpack.c.l.b16 %v812
    %v1084 = vunpack.c.h.b16 %v812
    %v1085 = vunpack.c.l.b16 %v813
    %v1086 = vunpack.c.h.b16 %v813
    %v1087 = vunpack.c.l.b16 %v814
    %v1088 = vunpack.c.h.b16 %v814
    %v1089 = vunpack.c.l.b16 %v815
    %v1090 = vunpack.c.h.b16 %v815
    %v1091 = vunpack.c.l.b16 %v816
    %v1092 = vunpack.c.h.b16 %v816
    %v1093 = vunpack.c.l.b16 %v817
    %v1094 = vunpack.c.h.b16 %v817
    %v1095 = vunpack.c.l.b16 %v818
    %v1096 = vunpack.c.h.b16 %v818
    %v1097 = vunpack.c.l.b16 %v819
    %v1098 = vunpack.c.h.b16 %v819
    %v1099 = vunpack.c.l.b16 %v820
    %v1100 = vunpack.c.h.b16 %v820
    %v1101 = vunpack.c.l.b16 %v821
    %v1102 = vunpack.c.h.b16 %v821
    %v1103 = vunpack.c.l.b16 %v822
    %v1104 = vunpack.c.h.b16 %v822
    %v1105 = vunpack.c.l.b16 %v823
    %v1106 = vunpack.c.h.b16 %v823
    %v1107 = vunpack.c.l.b16 %v824
    %v1108 = vunpack.c.h.b16 %v824
    %v1109 = vunpack.c.l.b16 %v825
    %v1110 = vunpack.c.h.b16 %v825
    %v1111 = vunpack.c.l.b16 %v826
    %v1112 = vunpack.c.h.b16 %v826
    %v1113 = vunpack.c.l.b16 %v827
    %v1114 = vunpack.c.h.b16 %v827
    %v1115 = vunpack.c.l.b16 %v828
    %v1116 = vunpack.c.h.b16 %v828
    %v1117 = vunpack.c.l.b16 %v829
    %v1118 = vunpack.c.h.b16 %v829
    %v1119 = vunpack.c.l.b16 %v830
    %v1120 = vunpack.c.h.b16 %v830
    %v1121 = vunpack.c.l.b16 %v831
    %v1122 = vunpack.c.h.b16 %v831
    %v1123 = vunpack.c.l.b16 %v832
    %v1124 = vunpack.c.h.b16 %v832
    %v1125 = vunpack.c.l.b16 %v833
    %v1126 = vunpack.c.h.b16 %v833
    %v1127 = vunpack.c.l.b16 %v834
    %v1128 = vunpack.c.h.b16 %v834
    %v1129 = vunpack.c.l.b16 %v835
    %v1130 = vunpack.c.h.b16 %v835
    %v1131 = vunpack.c.l.b16 %v836
    %v1132 = vunpack.c.h.b16 %v836
    %v1133 = vunpack.c.l.b16 %v837
    %v1134 = vunpack.c.h.b16 %v837
    %v1135 = vunpack.c.l.b16 %v838
    %v1136 = vunpack.c.h.b16 %v838
    %v1137 = vunpack.c.l.b16 %v839
    %v1138 = vunpack.c.h.b16 %v839
    %v1139 = vunpack.c.l.b16 %v840
    %v1140 = vunpack.c.h.b16 %v840
    %v1141 = vunpack.c.l.b16 %v841
    %v1142 = vunpack.c.h.b16 %v841
    %v1143 = vunpack.c.l.b16 %v842
    %v1144 = vunpack.c.h.b16 %v842
    %v1145 = vunpack.c.l.b16 %v843
    %v1146 = vunpack.c.h.b16 %v843
    %v1147 = vunpack.c.l.b16 %v844
    %v1148 = vunpack.c.h.b16 %v844
    %v1149 = vunpack.c.l.b16 %v845
    %v1150 = vunpack.c.h.b16 %v845
    %v1151 = vunpack.c.l.b16 %v846
    %v1152 = vunpack.c.h.b16 %v846
    %v1153 = vunpack.c.l.b16 %v847
    %v1154 = vunpack.c.h.b16 %v847
    %v1155 = vunpack.c.l.b16 %v848
    %v1156 = vunpack.c.h.b16 %v848
    %v1157 = vunpack.c.l.b16 %v849
    %v1158 = vunpack.c.h.b16 %v849
    %v1159 = vunpack.c.l.b16 %v850
    %v1160 = vunpack.c.h.b16 %v850
    %v1161 = vunpack.c.l.b16 %v851
    %v1162 = vunpack.c.h.b16 %v851
    %v1163 = vunpack.c.l.b16 %v852
    %v1164 = vunpack.c.h.b16 %v852
    %v1165 = vunpack.c.l.b16 %v853
    %v1166 = vunpack.c.h.b16 %v853
    %v1167 = vunpack.c.l.b16 %v854
    %v1168 = vunpack.c.h.b16 %v854
    %v1169 = vunpack.c.l.b16 %v855
    %v1170 = vunpack.c.h.b16 %v855
    %v1171 = vunpack.c.l.b16 %v856
    %v1172 = vunpack.c.h.b16 %v856
    %v1173 = vunpack.c.l.b16 %v857
    %v1174 = vunpack.c.h.b16 %v857
    %v1175 = vunpack.c.l.b16 %v858
    %v1176 = vunpack.c.h.b16 %v858
    %v1177 = vunpack.c.l.b16 %v859
    %v1178 = vunpack.c.h.b16 %v859
    %v1179 = vunpack.c.l.b16 %v860
    %v1180 = vunpack.c.h.b16 %v860
    %v1181 = vunpack.c.l.b16 %v861
    %v1182 = vunpack.c.h.b16 %v861
    %v1183 = vunpack.c.l.b16 %v862
    %v1184 = vunpack.c.h.b16 %v862
    %v1185 = vunpack.c.l.b16 %v863
    %v1186 = vunpack.c.h.b16 %v863
    %v1187 = vunpack.c.l.b16 %v864
    %v1188 = vunpack.c.h.b16 %v864
    %v1189 = vunpack.c.l.b16 %v865
    %v1190 = vunpack.c.h.b16 %v865
    %v1191 = vunpack.c.l.b16 %v866
    %v1192 = vunpack.c.h.b16 %v866
    %v1193 = vunpack.c.l.b16 %v867
    %v1194 = vunpack.c.h.b16 %v867
    %v1195 = vunpack.c.l.b16 %v868
    %v1196 = vunpack.c.h.b16 %v868
    %v1197 = vunpack.c.l.b16 %v869
    %v1198 = vunpack.c.h.b16 %v869
    %v1199 = vunpack.c.l.b16 %v870
    %v1200 = vunpack.c.h.b16 %v870
    %v1201 = vunpack.c.l.b16 %v871
    %v1202 = vunpack.c.h.b16 %v871
    %v1203 = vunpack.c.l.b16 %v872
    %v1204 = vunpack.c.h.b16 %v872
    %v1205 = vunpack.c.l.b16 %v873
    %v1206 = vunpack.c.h.b16 %v873
    %v1207 = vunpack.c.l.b16 %v874
    %v1208 = vunpack.c.h.b16 %v874
    %v1209 = vunpack.c.l.b16 %v875
    %v1210 = vunpack.c.h.b16 %v875
    %v1211 = vunpack.c.l.b16 %v876
    %v1212 = vunpack.c.h.b16 %v876
    %v1213 = vunpack.c.l.b16 %v877
    %v1214 = vunpack.c.h.b16 %v877
    %v1215 = vunpack.c.l.b16 %v878
    %v1216 = vunpack.c.h.b16 %v878
    %v1217 = vunpack.c.l.b16 %v879
    %v1218 = vunpack.c.h.b16 %v879
    %v1219 = vunpack.c.l.b16 %v880
    %v1220 = vunpack.c.h.b16 %v880
    %v1221 = vunpack.c.l.b16 %v881
    %v1222 = vunpack.c.h.b16 %v881
    %v1223 = vunpack.c.l.b16 %v882
    %v1224 = vunpack.c.h.b16 %v882
    %v1225 = vunpack.c.l.b16 %v883
    %v1226 = vunpack.c.h.b16 %v883
    %v1227 = vunpack.c.l.b16 %v884
    %v1228 = vunpack.c.h.b16 %v884
    %v1229 = vunpack.c.l.b16 %v885
    %v1230 = vunpack.c.h.b16 %v885
    %v1231 = vunpack.c.l.b16 %v886
    %v1232 = vunpack.c.h.b16 %v886
    %v1233 = vunpack.c.l.b16 %v887
    %v1234 = vunpack.c.h.b16 %v887
    %v1235 = vunpack.c.l.b16 %v888
    %v1236 = vunpack.c.h.b16 %v888
    %v1237 = vunpack.c.l.b16 %v889
    %v1238 = vunpack.c.h.b16 %v889
    %v1239 = vunpack.c.l.b16 %v890
    %v1240 = vunpack.c.h.b16 %v890
    %v1241 = vunpack.c.l.b16 %v891
    %v1242 = vunpack.c.h.b16 %v891
    %v1243 = vunpack.c.l.b16 %v892
    %v1244 = vunpack.c.h.b16 %v892
    %v1245 = vunpack.c.l.b16 %v893
    %v1246 = vunpack.c.h.b16 %v893
    %v1247 = vunpack.c.l.b16 %v894
    %v1248 = vunpack.c.h.b16 %v894
    %v1249 = vunpack.c.l.b16 %v895
    %v1250 = vunpack.c.h.b16 %v895
    %v1251 = vunpack.c.l.b16 %v896
    %v1252 = vunpack.c.h.b16 %v896
    %v1253 = vunpack.c.l.b16 %v897
    %v1254 = vunpack.c.h.b16 %v897
    %v1255 = vunpack.c.l.b16 %v898
    %v1256 = vunpack.c.h.b16 %v898
    %v1257 = vunpack.c.l.b16 %v899
    %v1258 = vunpack.c.h.b16 %v899
    %v1259 = vunpack.c.l.b16 %v900
    %v1260 = vunpack.c.h.b16 %v900
    %v1261 = vunpack.c.l.b16 %v901
    %v1262 = vunpack.c.h.b16 %v901
    %v1263 = vunpack.c.l.b16 %v902
    %v1264 = vunpack.c.h.b16 %v902
    %v1265 = vunpack.c.l.b16 %v903
    %v1266 = vunpack.c.h.b16 %v903
    %v1267 = vunpack.c.l.b16 %v904
    %v1268 = vunpack.c.h.b16 %v904
    %v1269 = vunpack.c.l.b16 %v905
    %v1270 = vunpack.c.h.b16 %v905
    %v1271 = vunpack.c.l.b16 %v906
    %v1272 = vunpack.c.h.b16 %v906
    %v1273 = vunpack.c.l.b16 %v907
    %v1274 = vunpack.c.h.b16 %v907
    %v1275 = vunpack.c.l.b16 %v908
    %v1276 = vunpack.c.h.b16 %v908
    %v1277 = vunpack.c.l.b16 %v909
    %v1278 = vunpack.c.h.b16 %v909
    %v1279 = vunpack.c.l.b16 %v910
    %v1280 = vunpack.c.h.b16 %v910
    %v1281 = vunpack.c.l.b16 %v911
    %v1282 = vunpack.c.h.b16 %v911
    %v1283 = vunpack.c.l.b16 %v912
    %v1284 = vunpack.c.h.b16 %v912
    %v1285 = vunpack.c.l.b16 %v913
    %v1286 = vunpack.c.h.b16 %v913
    %v1287 = vunpack.c.l.b16 %v914
    %v1288 = vunpack.c.h.b16 %v914
    %v1289 = vunpack.c.l.b16 %v915
    %v1290 = vunpack.c.h.b16 %v915
    %v1291 = vunpack.c.l.b16 %v916
    %v1292 = vunpack.c.h.b16 %v916
    %v1293 = vunpack.c.l.b16 %v917
    %v1294 = vunpack.c.h.b16 %v917
    %v1295 = vunpack.c.l.b16 %v918
    %v1296 = vunpack.c.h.b16 %v918
    %v1297 = vunpack.c.l.b16 %v919
    %v1298 = vunpack.c.h.b16 %v919
    %v1299 = vunpack.c.l.b16 %v920
    %v1300 = vunpack.c.h.b16 %v920
    %v1301 = vunpack.c.l.b16 %v921
    %v1302 = vunpack.c.h.b16 %v921
    %v1303 = vunpack.c.l.b16 %v922
    %v1304 = vunpack.c.h.b16 %v922
    %v1305 = vunpack.c.l.b16 %v923
    %v1306 = vunpack.c.h.b16 %v923
    %v1307 = vunpack.c.l.b16 %v924
    %v1308 = vunpack.c.h.b16 %v924
    %v1309 = vpack.c.b16 %v1057, %v1053
    %v1310 = vpack.c.b16 %v1058, %v1054
    %v1311 = vpack.c.b16 %v1059, %v1055
    %v1312 = vpack.c.b16 %v1060, %v1056
    %v1313 = vpack.c.b16 %v1065, %v1061
    %v1314 = vpack.c.b16 %v1066, %v1062
    %v1315 = vpack.c.b16 %v1067, %v1063
    %v1316 = vpack.c.b16 %v1068, %v1064
    %v1317 = vpack.c.b16 %v1073, %v1069
    %v1318 = vpack.c.b16 %v1074, %v1070
    %v1319 = vpack.c.b16 %v1075, %v1071
    %v1320 = vpack.c.b16 %v1076, %v1072
    %v1321 = vpack.c.b16 %v1081, %v1077
    %v1322 = vpack.c.b16 %v1082, %v1078
    %v1323 = vpack.c.b16 %v1083, %v1079
    %v1324 = vpack.c.b16 %v1084, %v1080
    %v1325 = vpack.c.b16 %v1089, %v1085
    %v1326 = vpack.c.b16 %v1090, %v1086
    %v1327 = vpack.c.b16 %v1091, %v1087
    %v1328 = vpack.c.b16 %v1092, %v1088
    %v1329 = vpack.c.b16 %v1097, %v1093
    %v1330 = vpack.c.b16 %v1098, %v1094
    %v1331 = vpack.c.b16 %v1099, %v1095
    %v1332 = vpack.c.b16 %v1100, %v1096
    %v1333 = vpack.c.b16 %v1105, %v1101
    %v1334 = vpack.c.b16 %v1106, %v1102
    %v1335 = vpack.c.b16 %v1107, %v1103
    %v1336 = vpack.c.b16 %v1108, %v1104
    %v1337 = vpack.c.b16 %v1113, %v1109
    %v1338 = vpack.c.b16 %v1114, %v1110
    %v1339 = vpack.c.b16 %v1115, %v1111
    %v1340 = vpack.c.b16 %v1116, %v1112
    %v1341 = vpack.c.b16 %v1121, %v1117
    %v1342 = vpack.c.b16 %v1122, %v1118
    %v1343 = vpack.c.b16 %v1123, %v1119
    %v1344 = vpack.c.b16 %v1124, %v1120
    %v1345 = vpack.c.b16 %v1129, %v1125
    %v1346 = vpack.c.b16 %v1130, %v1126
    %v1347 = vpack.c.b16 %v1131, %v1127
    %v1348 = vpack.c.b16 %v1132, %v1128
    %v1349 = vpack.c.b16 %v1137, %v1133
    %v1350 = vpack.c.b16 %v1138, %v1134
    %v1351 = vpack.c.b16 %v1139, %v1135
    %v1352 = vpack.c.b16 %v1140, %v1136
    %v1353 = vpack.c.b16 %v1145, %v1141
    %v1354 = vpack.c.b16 %v1146, %v1142
    %v1355 = vpack.c.b16 %v1147, %v1143
    %v1356 = vpack.c.b16 %v1148, %v1144
    %v1357 = vpack.c.b16 %v1153, %v1149
    %v1358 = vpack.c.b16 %v1154, %v1150
    %v1359 = vpack.c.b16 %v1155, %v1151
    %v1360 = vpack.c.b16 %v1156, %v1152
    %v1361 = vpack.c.b16 %v1161, %v1157
    %v1362 = vpack.c.b16 %v1162, %v1158
    %v1363 = vpack.c.b16 %v1163, %v1159
    %v1364 = vpack.c.b16 %v1164, %v1160
    %v1365 = vpack.c.b16 %v1169, %v1165
    %v1366 = vpack.c.b16 %v1170, %v1166
    %v1367 = vpack.c.b16 %v1171, %v1167
    %v1368 = vpack.c.b16 %v1172, %v1168
    %v1369 = vpack.c.b16 %v1177, %v1173
    %v1370 = vpack.c.b16 %v1178, %v1174
    %v1371 = vpack.c.b16 %v1179, %v1175
    %v1372 = vpack.c.b16 %v1180, %v1176
    %v1373 = vpack.c.b16 %v1185, %v1181
    %v1374 = vpack.c.b16 %v1186, %v1182
    %v1375 = vpack.c.b16 %v1187, %v1183
    %v1376 = vpack.c.b16 %v1188, %v1184
    %v1377 = vpack.c.b16 %v1193, %v1189
    %v1378 = vpack.c.b16 %v1194, %v1190
    %v1379 = vpack.c.b16 %v1195, %v1191
    %v1380 = vpack.c.b16 %v1196, %v1192
    %v1381 = vpack.c.b16 %v1201, %v1197
    %v1382 = vpack.c.b16 %v1202, %v1198
    %v1383 = vpack.c.b16 %v1203, %v1199
    %v1384 = vpack.c.b16 %v1204, %v1200
    %v1385 = vpack.c.b16 %v1209, %v1205
    %v1386 = vpack.c.b16 %v1210, %v1206
    %v1387 = vpack.c.b16 %v1211, %v1207
    %v1388 = vpack.c.b16 %v1212, %v1208
    %v1389 = vpack.c.b16 %v1217, %v1213
    %v1390 = vpack.c.b16 %v1218, %v1214
    %v1391 = vpack.c.b16 %v1219, %v1215
    %v1392 = vpack.c.b16 %v1220, %v1216
    %v1393 = vpack.c.b16 %v1225, %v1221
    %v1394 = vpack.c.b16 %v1226, %v1222
    %v1395 = vpack.c.b16 %v1227, %v1223
    %v1396 = vpack.c.b16 %v1228, %v1224
    %v1397 = vpack.c.b16 %v1233, %v1229
    %v1398 = vpack.c.b16 %v1234, %v1230
    %v1399 = vpack.c.b16 %v1235, %v1231
    %v1400 = vpack.c.b16 %v1236, %v1232
    %v1401 = vpack.c.b16 %v1241, %v1237
    %v1402 = vpack.c.b16 %v1242, %v1238
    %v1403 = vpack.c.b16 %v1243, %v1239
    %v1404 = vpack.c.b16 %v1244, %v1240
    %v1405 = vpack.c.b16 %v1249, %v1245
    %v1406 = vpack.c.b16 %v1250, %v1246
    %v1407 = vpack.c.b16 %v1251, %v1247
    %v1408 = vpack.c.b16 %v1252, %v1248
    %v1409 = vpack.c.b16 %v1257, %v1253
    %v1410 = vpack.c.b16 %v1258, %v1254
    %v1411 = vpack.c.b16 %v1259, %v1255
    %v1412 = vpack.c.b16 %v1260, %v1256
    %v1413 = vpack.c.b16 %v1265, %v1261
    %v1414 = vpack.c.b16 %v1266, %v1262
    %v1415 = vpack.c.b16 %v1267, %v1263
    %v1416 = vpack.c.b16 %v1268, %v1264
    %v1417 = vpack.c.b16 %v1273, %v1269
    %v1418 = vpack.c.b16 %v1274, %v1270
    %v1419 = vpack.c.b16 %v1275, %v1271
    %v1420 = vpack.c.b16 %v1276, %v1272
    %v1421 = vpack.c.b16 %v1281, %v1277
    %v1422 = vpack.c.b16 %v1282, %v1278
    %v1423 = vpack.c.b16 %v1283, %v1279
    %v1424 = vpack.c.b16 %v1284, %v1280
    %v1425 = vpack.c.b16 %v1289, %v1285
    %v1426 = vpack.c.b16 %v1290, %v1286
    %v1427 = vpack.c.b16 %v1291, %v1287
    %v1428 = vpack.c.b16 %v1292, %v1288
    %v1429 = vpack.c.b16 %v1297, %v1293
    %v1430 = vpack.c.b16 %v1298, %v1294
    %v1431 = vpack.c.b16 %v1299, %v1295
    %v1432 = vpack.c.b16 %v1300, %v1296
    %v1433 = vpack.c.b16 %v1305, %v1301
    %v1434 = vpack.c.b16 %v1306, %v1302
    %v1435 = vpack.c.b16 %v1307, %v1303
    %v1436 = vpack.c.b16 %v1308, %v1304
    %1565 = vmatprep.subr.bf16.mxu0 %v1310
    %1566 = vmatpush1.bf16.msra.mxu0 %v1309
    %1567 = vmatprep.subr.bf16.mxu0 %v1314
    %1568 = vmatpush1.bf16.msra.mxu0 %v1313
    %1569 = vmatprep.subr.bf16.mxu0 %v1318
    %1570 = vmatpush1.bf16.msra.mxu0 %v1317
    %1571 = vmatprep.subr.bf16.mxu0 %v1322
    %1572 = vmatpush1.bf16.msra.mxu0 %v1321
    %1573 = vmatprep.subr.bf16.mxu0 %v1326
    %1574 = vmatpush1.bf16.msra.mxu0 %v1325
    %1575 = vmatprep.subr.bf16.mxu0 %v1330
    %1576 = vmatpush1.bf16.msra.mxu0 %v1329
    %1577 = vmatprep.subr.bf16.mxu0 %v1334
    %1578 = vmatpush1.bf16.msra.mxu0 %v1333
    %1579 = vmatprep.subr.bf16.mxu0 %v1338
    %1580 = vmatpush1.bf16.msra.mxu0 %v1337
    %1581 = vmatprep.subr.bf16.mxu0 %v1342
    %1582 = vmatpush1.bf16.msra.mxu0 %v1341
    %1583 = vmatprep.subr.bf16.mxu0 %v1346
    %1584 = vmatpush1.bf16.msra.mxu0 %v1345
    %1585 = vmatprep.subr.bf16.mxu0 %v1350
    %1586 = vmatpush1.bf16.msra.mxu0 %v1349
    %1587 = vmatprep.subr.bf16.mxu0 %v1354
    %1588 = vmatpush1.bf16.msra.mxu0 %v1353
    %1589 = vmatprep.subr.bf16.mxu0 %v1358
    %1590 = vmatpush1.bf16.msra.mxu0 %v1357
    %1591 = vmatprep.subr.bf16.mxu0 %v1362
    %1592 = vmatpush1.bf16.msra.mxu0 %v1361
    %1593 = vmatprep.subr.bf16.mxu0 %v1366
    %1594 = vmatpush1.bf16.msra.mxu0 %v1365
    %1595 = vmatprep.subr.bf16.mxu0 %v1370
    %1596 = vmatpush1.bf16.msra.mxu0 %v1369
    %1597 = vmatprep.mubr.bf16.mxu0 %v794
    %1598 = vmatmul.mubr.bf16.gmra.mrb[0].mxu0 %v793
    %v1599 = vpop.f32.mrb[0].mxu0
    %v1600 = vadd.f32 0.0, %v1599
    %v1601 = vpop.f32.mrb[0].mxu0
    %v1602 = vadd.f32 0.0, %v1601
    %v1603 = vpop.f32.mrb[0].mxu0
    %v1604 = vpop.f32.mrb[0].mxu0
    %1605 = vdwg.mxu0
    %1606 = vmatprep.subr.bf16.mxu0 %v1374
    %1607 = vmatpush1.bf16.msra.mxu0 %v1373
    %1608 = vmatprep.subr.bf16.mxu0 %v1378
    %1609 = vmatpush1.bf16.msra.mxu0 %v1377
    %1610 = vmatprep.subr.bf16.mxu0 %v1382
    %1611 = vmatpush1.bf16.msra.mxu0 %v1381
    %1612 = vmatprep.subr.bf16.mxu0 %v1386
    %1613 = vmatpush1.bf16.msra.mxu0 %v1385
    %1614 = vmatprep.subr.bf16.mxu0 %v1390
    %1615 = vmatpush1.bf16.msra.mxu0 %v1389
    %1616 = vmatprep.subr.bf16.mxu0 %v1394
    %1617 = vmatpush1.bf16.msra.mxu0 %v1393
    %1618 = vmatprep.subr.bf16.mxu0 %v1398
    %1619 = vmatpush1.bf16.msra.mxu0 %v1397
    %1620 = vmatprep.subr.bf16.mxu0 %v1402
    %1621 = vmatpush1.bf16.msra.mxu0 %v1401
    %1622 = vmatprep.subr.bf16.mxu0 %v1406
    %1623 = vmatpush1.bf16.msra.mxu0 %v1405
    %1624 = vmatprep.subr.bf16.mxu0 %v1410
    %1625 = vmatpush1.bf16.msra.mxu0 %v1409
    %1626 = vmatprep.subr.bf16.mxu0 %v1414
    %1627 = vmatpush1.bf16.msra.mxu0 %v1413
    %1628 = vmatprep.subr.bf16.mxu0 %v1418
    %1629 = vmatpush1.bf16.msra.mxu0 %v1417
    %1630 = vmatprep.subr.bf16.mxu0 %v1422
    %1631 = vmatpush1.bf16.msra.mxu0 %v1421
    %1632 = vmatprep.subr.bf16.mxu0 %v1426
    %1633 = vmatpush1.bf16.msra.mxu0 %v1425
    %1634 = vmatprep.subr.bf16.mxu0 %v1430
    %1635 = vmatpush1.bf16.msra.mxu0 %v1429
    %1636 = vmatprep.subr.bf16.mxu0 %v1434
    %1637 = vmatpush1.bf16.msra.mxu0 %v1433
    %1638 = vmatprep.mubr.bf16.mxu0 %v796
    %1639 = vmatmul.mubr.bf16.gmra.mrb[0].mxu0 %v795
    %v1640 = vpop.f32.mrb[0].mxu0
    %v1641 = vadd.f32 %v1600, %v1640
    %v1642 = vpop.f32.mrb[0].mxu0
    %v1643 = vadd.f32 %v1602, %v1642
    %v1644 = vpop.f32.mrb[0].mxu0
    %v1645 = vpop.f32.mrb[0].mxu0
    %1646 = vdwg.mxu0
    %1647 = vmatprep.subr.bf16.mxu0 %v1312
    %1648 = vmatpush1.bf16.msra.mxu0 %v1311
    %1649 = vmatprep.subr.bf16.mxu0 %v1316
    %1650 = vmatpush1.bf16.msra.mxu0 %v1315
    %1651 = vmatprep.subr.bf16.mxu0 %v1320
    %1652 = vmatpush1.bf16.msra.mxu0 %v1319
    %1653 = vmatprep.subr.bf16.mxu0 %v1324
    %1654 = vmatpush1.bf16.msra.mxu0 %v1323
    %1655 = vmatprep.subr.bf16.mxu0 %v1328
    %1656 = vmatpush1.bf16.msra.mxu0 %v1327
    %1657 = vmatprep.subr.bf16.mxu0 %v1332
    %1658 = vmatpush1.bf16.msra.mxu0 %v1331
    %1659 = vmatprep.subr.bf16.mxu0 %v1336
    %1660 = vmatpush1.bf16.msra.mxu0 %v1335
    %1661 = vmatprep.subr.bf16.mxu0 %v1340
    %1662 = vmatpush1.bf16.msra.mxu0 %v1339
    %1663 = vmatprep.subr.bf16.mxu0 %v1344
    %1664 = vmatpush1.bf16.msra.mxu0 %v1343
    %1665 = vmatprep.subr.bf16.mxu0 %v1348
    %1666 = vmatpush1.bf16.msra.mxu0 %v1347
    %1667 = vmatprep.subr.bf16.mxu0 %v1352
    %1668 = vmatpush1.bf16.msra.mxu0 %v1351
    %1669 = vmatprep.subr.bf16.mxu0 %v1356
    %1670 = vmatpush1.bf16.msra.mxu0 %v1355
    %1671 = vmatprep.subr.bf16.mxu0 %v1360
    %1672 = vmatpush1.bf16.msra.mxu0 %v1359
    %1673 = vmatprep.subr.bf16.mxu0 %v1364
    %1674 = vmatpush1.bf16.msra.mxu0 %v1363
    %1675 = vmatprep.subr.bf16.mxu0 %v1368
    %1676 = vmatpush1.bf16.msra.mxu0 %v1367
    %1677 = vmatprep.subr.bf16.mxu0 %v1372
    %1678 = vmatpush1.bf16.msra.mxu0 %v1371
    %1679 = vmatprep.mubr.bf16.mxu0 %v794
    %1680 = vmatmul.mubr.bf16.gmra.mrb[0].mxu0 %v793
    %v1681 = vpop.f32.mrb[0].mxu0
    %v1682 = vadd.f32 0.0, %v1681
    %v1683 = vpop.f32.mrb[0].mxu0
    %v1684 = vadd.f32 0.0, %v1683
    %v1685 = vpop.f32.mrb[0].mxu0
    %v1686 = vpop.f32.mrb[0].mxu0
    %1687 = vdwg.mxu0
    %1688 = vmatprep.subr.bf16.mxu0 %v1376
    %1689 = vmatpush1.bf16.msra.mxu0 %v1375
    %1690 = vmatprep.subr.bf16.mxu0 %v1380
    %1691 = vmatpush1.bf16.msra.mxu0 %v1379
    %1692 = vmatprep.subr.bf16.mxu0 %v1384
    %1693 = vmatpush1.bf16.msra.mxu0 %v1383
    %1694 = vmatprep.subr.bf16.mxu0 %v1388
    %1695 = vmatpush1.bf16.msra.mxu0 %v1387
    %1696 = vmatprep.subr.bf16.mxu0 %v1392
    %1697 = vmatpush1.bf16.msra.mxu0 %v1391
    %1698 = vmatprep.subr.bf16.mxu0 %v1396
    %1699 = vmatpush1.bf16.msra.mxu0 %v1395
    %1700 = vmatprep.subr.bf16.mxu0 %v1400
    %1701 = vmatpush1.bf16.msra.mxu0 %v1399
    %1702 = vmatprep.subr.bf16.mxu0 %v1404
    %1703 = vmatpush1.bf16.msra.mxu0 %v1403
    %1704 = vmatprep.subr.bf16.mxu0 %v1408
    %1705 = vmatpush1.bf16.msra.mxu0 %v1407
    %1706 = vmatprep.subr.bf16.mxu0 %v1412
    %1707 = vmatpush1.bf16.msra.mxu0 %v1411
    %1708 = vmatprep.subr.bf16.mxu0 %v1416
    %1709 = vmatpush1.bf16.msra.mxu0 %v1415
    %1710 = vmatprep.subr.bf16.mxu0 %v1420
    %1711 = vmatpush1.bf16.msra.mxu0 %v1419
    %1712 = vmatprep.subr.bf16.mxu0 %v1424
    %1713 = vmatpush1.bf16.msra.mxu0 %v1423
    %1714 = vmatprep.subr.bf16.mxu0 %v1428
    %1715 = vmatpush1.bf16.msra.mxu0 %v1427
    %1716 = vmatprep.subr.bf16.mxu0 %v1432
    %1717 = vmatpush1.bf16.msra.mxu0 %v1431
    %1718 = vmatprep.subr.bf16.mxu0 %v1436
    %1719 = vmatpush1.bf16.msra.mxu0 %v1435
    %1720 = vmatprep.mubr.bf16.mxu0 %v796
    %1721 = vmatmul.mubr.bf16.gmra.mrb[0].mxu0 %v795
    %v1722 = vpop.f32.mrb[0].mxu0
    %v1723 = vadd.f32 %v1682, %v1722
    %v1724 = vpop.f32.mrb[0].mxu0
    %v1725 = vadd.f32 %v1684, %v1724
    %v1726 = vpop.f32.mrb[0].mxu0
    %v1727 = vpop.f32.mrb[0].mxu0
    %1728 = vdwg.mxu0
    %v1729 = vrot.slane %v1641, 4
    %v1730 = vadd.f32 %v1641, %v1729
    %v1731 = vrot.slane %v1730, 2
    %v1732 = vadd.f32 %v1730, %v1731
    %v1733 = vrot.slane %v1732, 1
    %v1734 = vadd.f32 %v1732, %v1733
    %v1735 = vrot.slane %v1643, 4
    %v1736 = vadd.f32 %v1643, %v1735
    %v1737 = vrot.slane %v1736, 2
    %v1738 = vadd.f32 %v1736, %v1737
    %v1739 = vrot.slane %v1738, 1
    %v1740 = vadd.f32 %v1738, %v1739
    %v1741 = vrot.slane %v1723, 4
    %v1742 = vadd.f32 %v1723, %v1741
    %v1743 = vrot.slane %v1742, 2
    %v1744 = vadd.f32 %v1742, %v1743
    %v1745 = vrot.slane %v1744, 1
    %v1746 = vadd.f32 %v1744, %v1745
    %v1747 = vrot.slane %v1725, 4
    %v1748 = vadd.f32 %v1725, %v1747
    %v1749 = vrot.slane %v1748, 2
    %v1750 = vadd.f32 %v1748, %v1749
    %v1751 = vrot.slane %v1750, 1
    %v1752 = vadd.f32 %v1750, %v1751
    %v1753 = vmul.f32 %v1734, 0.125
    %v1754 = vmul.f32 %v1740, 0.125
    %v1755 = vmul.f32 %v1746, 0.125
    %v1756 = vmul.f32 %v1752, 0.125
    %v1757 = vmul.f32 %v1641, %v1641
    %v1758 = vmul.f32 %v1643, %v1643
    %v1759 = vmul.f32 %v1723, %v1723
    %v1760 = vmul.f32 %v1725, %v1725
    %v1761 = vrot.slane %v1757, 4
    %v1762 = vadd.f32 %v1757, %v1761
    %v1763 = vrot.slane %v1762, 2
    %v1764 = vadd.f32 %v1762, %v1763
    %v1765 = vrot.slane %v1764, 1
    %v1766 = vadd.f32 %v1764, %v1765
    %v1767 = vrot.slane %v1758, 4
    %v1768 = vadd.f32 %v1758, %v1767
    %v1769 = vrot.slane %v1768, 2
    %v1770 = vadd.f32 %v1768, %v1769
    %v1771 = vrot.slane %v1770, 1
    %v1772 = vadd.f32 %v1770, %v1771
    %v1773 = vrot.slane %v1759, 4
    %v1774 = vadd.f32 %v1759, %v1773
    %v1775 = vrot.slane %v1774, 2
    %v1776 = vadd.f32 %v1774, %v1775
    %v1777 = vrot.slane %v1776, 1
    %v1778 = vadd.f32 %v1776, %v1777
    %v1779 = vrot.slane %v1760, 4
    %v1780 = vadd.f32 %v1760, %v1779
    %v1781 = vrot.slane %v1780, 2
    %v1782 = vadd.f32 %v1780, %v1781
    %v1783 = vrot.slane %v1782, 1
    %v1784 = vadd.f32 %v1782, %v1783
    %v1785 = vmul.f32 %v1766, 0.125
    %v1786 = vmul.f32 %v1772, 0.125
    %v1787 = vmul.f32 %v1778, 0.125
    %v1788 = vmul.f32 %v1784, 0.125
    %v1789 = vmul.f32 %v1753, %v1753
    %v1790 = vmul.f32 %v1754, %v1754
    %v1791 = vmul.f32 %v1755, %v1755
    %v1792 = vmul.f32 %v1756, %v1756
    %v1793 = vsub.f32 %v1785, %v1789
    %v1794 = vsub.f32 %v1786, %v1790
    %v1795 = vsub.f32 %v1787, %v1791
    %v1796 = vsub.f32 %v1788, %v1792
    %v1797 = vmax.f32 %v1793, 0.0
    %v1798 = vmax.f32 %v1794, 0.0
    %v1799 = vmax.f32 %v1795, 0.0
    %v1800 = vmax.f32 %v1796, 0.0
    %v1801 = vadd.f32 %v1797, 1e-05
    %v1802 = vadd.f32 %v1798, 1e-05
    %v1803 = vadd.f32 %v1799, 1e-05
    %v1804 = vadd.f32 %v1800, 1e-05
    %v1805 = vrsqrt.pop %v1801
    %v1806 = vrsqrt.pop %v1802
    %v1807 = vrsqrt.pop %v1803
    %v1808 = vrsqrt.pop %v1804
    %v1813 = vcombine.low %v1805, %v1806
    %v1814 = vcombine.low %v1807, %v1808
    %v1815 = vrot.slane %v1813, 6
    %v1816 = vrot.slane %v1814, 6
    %v1819 = vmul.f32 %v101, %v1815
    %v1820 = vmul.f32 %v102, %v1816
    %v1823 = vlaneseq
    %v1824 = vshrl.u32 %v1823, 7
    %v1825 = vsub.s32 2, %v1824
    %v1826 = vrot.slane %v1819, %v1825
    %v1827 = vlaneseq
    %v1828 = vshrl.u32 %v1827, 7
    %v1829 = vsub.s32 6, %v1828
    %v1830 = vrot.slane %v1819, %v1829
    %v1831 = vlaneseq
    %v1832 = vshrl.u32 %v1831, 7
    %v1833 = vsub.s32 2, %v1832
    %v1834 = vrot.slane %v1820, %v1833
    %v1835 = vlaneseq
    %v1836 = vshrl.u32 %v1835, 7
    %v1837 = vsub.s32 6, %v1836
    %v1838 = vrot.slane %v1820, %v1837
    %v1843 = vmul.f32 %v1753, %v1826
    %v1844 = vmul.f32 %v1754, %v1830
    %v1845 = vmul.f32 %v1755, %v1834
    %v1846 = vmul.f32 %v1756, %v1838
    %v1851 = vcombine.low %v1843, %v1844
    %v1852 = vcombine.low %v1845, %v1846
    %v1853 = vrot.slane %v1851, 5
    %v1854 = vrot.slane %v1852, 5
    %v1857 = vsub.f32 %v101, %v1853
    %v1858 = vsub.f32 %v102, %v1854
    %v1859 = vlaneseq
    %v1860 = vshrl.u32 %v1859, 7
    %v1861 = vsub.s32 2, %v1860
    %v1862 = vrot.slane %v1826, %v1861
    %v1863 = vlaneseq
    %v1864 = vshrl.u32 %v1863, 7
    %v1865 = vsub.s32 2, %v1864
    %v1866 = vrot.slane %v1830, %v1865
    %v1867 = vlaneseq
    %v1868 = vshrl.u32 %v1867, 7
    %v1869 = vsub.s32 2, %v1868
    %v1870 = vrot.slane %v1834, %v1869
    %v1871 = vlaneseq
    %v1872 = vshrl.u32 %v1871, 7
    %v1873 = vsub.s32 2, %v1872
    %v1874 = vrot.slane %v1838, %v1873
    %v1875 = vmul.f32 %v1641, %v1862
    %v1876 = vmul.f32 %v1643, %v1866
    %v1877 = vmul.f32 %v1723, %v1870
    %v1878 = vmul.f32 %v1725, %v1874
    %v1881 = vlaneseq
    %v1882 = vshrl.u32 %v1881, 7
    %v1883 = vsub.s32 3, %v1882
    %v1884 = vrot.slane %v1857, %v1883
    %v1885 = vlaneseq
    %v1886 = vshrl.u32 %v1885, 7
    %v1887 = vsub.s32 7, %v1886
    %v1888 = vrot.slane %v1857, %v1887
    %v1889 = vlaneseq
    %v1890 = vshrl.u32 %v1889, 7
    %v1891 = vsub.s32 3, %v1890
    %v1892 = vrot.slane %v1858, %v1891
    %v1893 = vlaneseq
    %v1894 = vshrl.u32 %v1893, 7
    %v1895 = vsub.s32 7, %v1894
    %v1896 = vrot.slane %v1858, %v1895
    %v1901 = vlaneseq
    %v1902 = vshrl.u32 %v1901, 7
    %v1903 = vsub.s32 3, %v1902
    %v1904 = vrot.slane %v1884, %v1903
    %v1905 = vlaneseq
    %v1906 = vshrl.u32 %v1905, 7
    %v1907 = vsub.s32 3, %v1906
    %v1908 = vrot.slane %v1888, %v1907
    %v1909 = vlaneseq
    %v1910 = vshrl.u32 %v1909, 7
    %v1911 = vsub.s32 3, %v1910
    %v1912 = vrot.slane %v1892, %v1911
    %v1913 = vlaneseq
    %v1914 = vshrl.u32 %v1913, 7
    %v1915 = vsub.s32 3, %v1914
    %v1916 = vrot.slane %v1896, %v1915
    %v1917 = vadd.f32 %v1875, %v1904
    %v1918 = vadd.f32 %v1876, %v1908
    %v1919 = vadd.f32 %v1877, %v1912
    %v1920 = vadd.f32 %v1878, %v1916
    %v1921 = vmax.f32 %v1917, 0.0
    %v1922 = vmax.f32 %v1918, 0.0
    %v1923 = vmax.f32 %v1919, 0.0
    %v1924 = vmax.f32 %v1920, 0.0
    %v1925 = vpack.c.bf16 %v1921, %v1921
    %v1926 = vpack.c.bf16 %v1922, %v1922
    %v1927 = vpack.c.bf16 %v1923, %v1923
    %v1928 = vpack.c.bf16 %v1924, %v1924
    %v1929 = vld [vmem:[#allocation8] sm:$0xf]
    %v1930 = vld [vmem:[#allocation8 + $0x4] sm:$0xf]
    %v1931 = vld [vmem:[#allocation8 + $0x8] sm:$0xf]
    %v1932 = vld [vmem:[#allocation8 + $0xc] sm:$0xf]
    %v1933 = vld [vmem:[#allocation8 + $0x10] sm:$0xf]
    %v1934 = vld [vmem:[#allocation8 + $0x14] sm:$0xf]
    %v1935 = vld [vmem:[#allocation8 + $0x18] sm:$0xf]
    %v1936 = vld [vmem:[#allocation8 + $0x1c] sm:$0xf]
    %v1937 = vld [vmem:[#allocation8 + $0x20] sm:$0xf]
    %v1938 = vld [vmem:[#allocation8 + $0x24] sm:$0xf]
    %v1939 = vld [vmem:[#allocation8 + $0x28] sm:$0xf]
    %v1940 = vld [vmem:[#allocation8 + $0x2c] sm:$0xf]
    %v1941 = vld [vmem:[#allocation8 + $0x30] sm:$0xf]
    %v1942 = vld [vmem:[#allocation8 + $0x34] sm:$0xf]
    %v1943 = vld [vmem:[#allocation8 + $0x38] sm:$0xf]
    %v1944 = vld [vmem:[#allocation8 + $0x3c] sm:$0xf]
    %v1945 = vld [vmem:[#allocation8 + $0x40] sm:$0xf]
    %v1946 = vld [vmem:[#allocation8 + $0x44] sm:$0xf]
    %v1947 = vld [vmem:[#allocation8 + $0x48] sm:$0xf]
    %v1948 = vld [vmem:[#allocation8 + $0x4c] sm:$0xf]
    %v1949 = vld [vmem:[#allocation8 + $0x50] sm:$0xf]
    %v1950 = vld [vmem:[#allocation8 + $0x54] sm:$0xf]
    %v1951 = vld [vmem:[#allocation8 + $0x58] sm:$0xf]
    %v1952 = vld [vmem:[#allocation8 + $0x5c] sm:$0xf]
    %v1953 = vld [vmem:[#allocation8 + $0x60] sm:$0xf]
    %v1954 = vld [vmem:[#allocation8 + $0x64] sm:$0xf]
    %v1955 = vld [vmem:[#allocation8 + $0x68] sm:$0xf]
    %v1956 = vld [vmem:[#allocation8 + $0x6c] sm:$0xf]
    %v1957 = vld [vmem:[#allocation8 + $0x70] sm:$0xf]
    %v1958 = vld [vmem:[#allocation8 + $0x74] sm:$0xf]
    %v1959 = vld [vmem:[#allocation8 + $0x78] sm:$0xf]
    %v1960 = vld [vmem:[#allocation8 + $0x7c] sm:$0xf]
    %v1961 = vld [vmem:[#allocation8 + $0x80] sm:$0xf]
    %v1962 = vld [vmem:[#allocation8 + $0x84] sm:$0xf]
    %v1963 = vld [vmem:[#allocation8 + $0x88] sm:$0xf]
    %v1964 = vld [vmem:[#allocation8 + $0x8c] sm:$0xf]
    %v1965 = vld [vmem:[#allocation8 + $0x90] sm:$0xf]
    %v1966 = vld [vmem:[#allocation8 + $0x94] sm:$0xf]
    %v1967 = vld [vmem:[#allocation8 + $0x98] sm:$0xf]
    %v1968 = vld [vmem:[#allocation8 + $0x9c] sm:$0xf]
    %v1969 = vld [vmem:[#allocation8 + $0xa0] sm:$0xf]
    %v1970 = vld [vmem:[#allocation8 + $0xa4] sm:$0xf]
    %v1971 = vld [vmem:[#allocation8 + $0xa8] sm:$0xf]
    %v1972 = vld [vmem:[#allocation8 + $0xac] sm:$0xf]
    %v1973 = vld [vmem:[#allocation8 + $0xb0] sm:$0xf]
    %v1974 = vld [vmem:[#allocation8 + $0xb4] sm:$0xf]
    %v1975 = vld [vmem:[#allocation8 + $0xb8] sm:$0xf]
    %v1976 = vld [vmem:[#allocation8 + $0xbc] sm:$0xf]
    %v1977 = vld [vmem:[#allocation8 + $0xc0] sm:$0xf]
    %v1978 = vld [vmem:[#allocation8 + $0xc4] sm:$0xf]
    %v1979 = vld [vmem:[#allocation8 + $0xc8] sm:$0xf]
    %v1980 = vld [vmem:[#allocation8 + $0xcc] sm:$0xf]
    %v1981 = vld [vmem:[#allocation8 + $0xd0] sm:$0xf]
    %v1982 = vld [vmem:[#allocation8 + $0xd4] sm:$0xf]
    %v1983 = vld [vmem:[#allocation8 + $0xd8] sm:$0xf]
    %v1984 = vld [vmem:[#allocation8 + $0xdc] sm:$0xf]
    %v1985 = vld [vmem:[#allocation8 + $0xe0] sm:$0xf]
    %v1986 = vld [vmem:[#allocation8 + $0xe4] sm:$0xf]
    %v1987 = vld [vmem:[#allocation8 + $0xe8] sm:$0xf]
    %v1988 = vld [vmem:[#allocation8 + $0xec] sm:$0xf]
    %v1989 = vld [vmem:[#allocation8 + $0xf0] sm:$0xf]
    %v1990 = vld [vmem:[#allocation8 + $0xf4] sm:$0xf]
    %v1991 = vld [vmem:[#allocation8 + $0xf8] sm:$0xf]
    %v1992 = vld [vmem:[#allocation8 + $0xfc] sm:$0xf]
    %v1993 = vld [vmem:[%s9] sm:$0x1]
    %v1995 = vlaneseq
    %v1996 = vshrl.u32 %v1995, 7
    %v1997 = vsub.s32 0, %v1996
    %v1998 = vrot.slane %v1993, %v1997
    %v2064 = vunpack.c.l.b16 %v1929
    %v2065 = vunpack.c.l.b16 %v1930
    %v2066 = vunpack.c.l.b16 %v1931
    %v2067 = vunpack.c.l.b16 %v1932
    %v2068 = vunpack.c.l.b16 %v1933
    %v2069 = vunpack.c.l.b16 %v1934
    %v2070 = vunpack.c.l.b16 %v1935
    %v2071 = vunpack.c.l.b16 %v1936
    %v2072 = vunpack.c.l.b16 %v1937
    %v2073 = vunpack.c.l.b16 %v1938
    %v2074 = vunpack.c.l.b16 %v1939
    %v2075 = vunpack.c.l.b16 %v1940
    %v2076 = vunpack.c.l.b16 %v1941
    %v2077 = vunpack.c.l.b16 %v1942
    %v2078 = vunpack.c.l.b16 %v1943
    %v2079 = vunpack.c.l.b16 %v1944
    %v2080 = vunpack.c.l.b16 %v1945
    %v2081 = vunpack.c.l.b16 %v1946
    %v2082 = vunpack.c.l.b16 %v1947
    %v2083 = vunpack.c.l.b16 %v1948
    %v2084 = vunpack.c.l.b16 %v1949
    %v2085 = vunpack.c.l.b16 %v1950
    %v2086 = vunpack.c.l.b16 %v1951
    %v2087 = vunpack.c.l.b16 %v1952
    %v2088 = vunpack.c.l.b16 %v1953
    %v2089 = vunpack.c.l.b16 %v1954
    %v2090 = vunpack.c.l.b16 %v1955
    %v2091 = vunpack.c.l.b16 %v1956
    %v2092 = vunpack.c.l.b16 %v1957
    %v2093 = vunpack.c.l.b16 %v1958
    %v2094 = vunpack.c.l.b16 %v1959
    %v2095 = vunpack.c.l.b16 %v1960
    %v2096 = vunpack.c.l.b16 %v1961
    %v2097 = vunpack.c.l.b16 %v1962
    %v2098 = vunpack.c.l.b16 %v1963
    %v2099 = vunpack.c.l.b16 %v1964
    %v2100 = vunpack.c.l.b16 %v1965
    %v2101 = vunpack.c.l.b16 %v1966
    %v2102 = vunpack.c.l.b16 %v1967
    %v2103 = vunpack.c.l.b16 %v1968
    %v2104 = vunpack.c.l.b16 %v1969
    %v2105 = vunpack.c.l.b16 %v1970
    %v2106 = vunpack.c.l.b16 %v1971
    %v2107 = vunpack.c.l.b16 %v1972
    %v2108 = vunpack.c.l.b16 %v1973
    %v2109 = vunpack.c.l.b16 %v1974
    %v2110 = vunpack.c.l.b16 %v1975
    %v2111 = vunpack.c.l.b16 %v1976
    %v2112 = vunpack.c.l.b16 %v1977
    %v2113 = vunpack.c.l.b16 %v1978
    %v2114 = vunpack.c.l.b16 %v1979
    %v2115 = vunpack.c.l.b16 %v1980
    %v2116 = vunpack.c.l.b16 %v1981
    %v2117 = vunpack.c.l.b16 %v1982
    %v2118 = vunpack.c.l.b16 %v1983
    %v2119 = vunpack.c.l.b16 %v1984
    %v2120 = vunpack.c.l.b16 %v1985
    %v2121 = vunpack.c.l.b16 %v1986
    %v2122 = vunpack.c.l.b16 %v1987
    %v2123 = vunpack.c.l.b16 %v1988
    %v2124 = vunpack.c.l.b16 %v1989
    %v2125 = vunpack.c.l.b16 %v1990
    %v2126 = vunpack.c.l.b16 %v1991
    %v2127 = vunpack.c.l.b16 %v1992
    %v2128 = vpack.c.b16 %v2065, %v2064
    %v2129 = vpack.c.b16 %v2067, %v2066
    %v2130 = vpack.c.b16 %v2069, %v2068
    %v2131 = vpack.c.b16 %v2071, %v2070
    %v2132 = vpack.c.b16 %v2073, %v2072
    %v2133 = vpack.c.b16 %v2075, %v2074
    %v2134 = vpack.c.b16 %v2077, %v2076
    %v2135 = vpack.c.b16 %v2079, %v2078
    %v2136 = vpack.c.b16 %v2081, %v2080
    %v2137 = vpack.c.b16 %v2083, %v2082
    %v2138 = vpack.c.b16 %v2085, %v2084
    %v2139 = vpack.c.b16 %v2087, %v2086
    %v2140 = vpack.c.b16 %v2089, %v2088
    %v2141 = vpack.c.b16 %v2091, %v2090
    %v2142 = vpack.c.b16 %v2093, %v2092
    %v2143 = vpack.c.b16 %v2095, %v2094
    %v2144 = vpack.c.b16 %v2097, %v2096
    %v2145 = vpack.c.b16 %v2099, %v2098
    %v2146 = vpack.c.b16 %v2101, %v2100
    %v2147 = vpack.c.b16 %v2103, %v2102
    %v2148 = vpack.c.b16 %v2105, %v2104
    %v2149 = vpack.c.b16 %v2107, %v2106
    %v2150 = vpack.c.b16 %v2109, %v2108
    %v2151 = vpack.c.b16 %v2111, %v2110
    %v2152 = vpack.c.b16 %v2113, %v2112
    %v2153 = vpack.c.b16 %v2115, %v2114
    %v2154 = vpack.c.b16 %v2117, %v2116
    %v2155 = vpack.c.b16 %v2119, %v2118
    %v2156 = vpack.c.b16 %v2121, %v2120
    %v2157 = vpack.c.b16 %v2123, %v2122
    %v2158 = vpack.c.b16 %v2125, %v2124
    %v2159 = vpack.c.b16 %v2127, %v2126
    %2192 = vmatprep.subr.bf16.mxu0 0
    %2193 = vmatpush1.bf16.msra.mxu0 %v2128
    %2194 = vmatprep.subr.bf16.mxu0 0
    %2195 = vmatpush1.bf16.msra.mxu0 %v2129
    %2196 = vmatprep.subr.bf16.mxu0 0
    %2197 = vmatpush1.bf16.msra.mxu0 %v2130
    %2198 = vmatprep.subr.bf16.mxu0 0
    %2199 = vmatpush1.bf16.msra.mxu0 %v2131
    %2200 = vmatprep.subr.bf16.mxu0 0
    %2201 = vmatpush1.bf16.msra.mxu0 %v2132
    %2202 = vmatprep.subr.bf16.mxu0 0
    %2203 = vmatpush1.bf16.msra.mxu0 %v2133
    %2204 = vmatprep.subr.bf16.mxu0 0
    %2205 = vmatpush1.bf16.msra.mxu0 %v2134
    %2206 = vmatprep.subr.bf16.mxu0 0
    %2207 = vmatpush1.bf16.msra.mxu0 %v2135
    %2208 = vmatprep.subr.bf16.mxu0 0
    %2209 = vmatpush1.bf16.msra.mxu0 %v2136
    %2210 = vmatprep.subr.bf16.mxu0 0
    %2211 = vmatpush1.bf16.msra.mxu0 %v2137
    %2212 = vmatprep.subr.bf16.mxu0 0
    %2213 = vmatpush1.bf16.msra.mxu0 %v2138
    %2214 = vmatprep.subr.bf16.mxu0 0
    %2215 = vmatpush1.bf16.msra.mxu0 %v2139
    %2216 = vmatprep.subr.bf16.mxu0 0
    %2217 = vmatpush1.bf16.msra.mxu0 %v2140
    %2218 = vmatprep.subr.bf16.mxu0 0
    %2219 = vmatpush1.bf16.msra.mxu0 %v2141
    %2220 = vmatprep.subr.bf16.mxu0 0
    %2221 = vmatpush1.bf16.msra.mxu0 %v2142
    %2222 = vmatprep.subr.bf16.mxu0 0
    %2223 = vmatpush1.bf16.msra.mxu0 %v2143
    %2224 = vmatprep.mubr.bf16.mxu0 %v1926
    %2225 = vmatmul.mubr.bf16.gmra.mrb[0].mxu0 %v1925
    %v2226 = vpop.f32.mrb[0].mxu0
    %v2227 = vadd.f32 %v1998, %v2226
    %v2228 = vpop.f32.mrb[0].mxu0
    %v2229 = vpop.f32.mrb[0].mxu0
    %v2230 = vpop.f32.mrb[0].mxu0
    %2231 = vdwg.mxu0
    %2232 = vmatprep.subr.bf16.mxu0 0
    %2233 = vmatpush1.bf16.msra.mxu0 %v2144
    %2234 = vmatprep.subr.bf16.mxu0 0
    %2235 = vmatpush1.bf16.msra.mxu0 %v2145
    %2236 = vmatprep.subr.bf16.mxu0 0
    %2237 = vmatpush1.bf16.msra.mxu0 %v2146
    %2238 = vmatprep.subr.bf16.mxu0 0
    %2239 = vmatpush1.bf16.msra.mxu0 %v2147
    %2240 = vmatprep.subr.bf16.mxu0 0
    %2241 = vmatpush1.bf16.msra.mxu0 %v2148
    %2242 = vmatprep.subr.bf16.mxu0 0
    %2243 = vmatpush1.bf16.msra.mxu0 %v2149
    %2244 = vmatprep.subr.bf16.mxu0 0
    %2245 = vmatpush1.bf16.msra.mxu0 %v2150
    %2246 = vmatprep.subr.bf16.mxu0 0
    %2247 = vmatpush1.bf16.msra.mxu0 %v2151
    %2248 = vmatprep.subr.bf16.mxu0 0
    %2249 = vmatpush1.bf16.msra.mxu0 %v2152
    %2250 = vmatprep.subr.bf16.mxu0 0
    %2251 = vmatpush1.bf16.msra.mxu0 %v2153
    %2252 = vmatprep.subr.bf16.mxu0 0
    %2253 = vmatpush1.bf16.msra.mxu0 %v2154
    %2254 = vmatprep.subr.bf16.mxu0 0
    %2255 = vmatpush1.bf16.msra.mxu0 %v2155
    %2256 = vmatprep.subr.bf16.mxu0 0
    %2257 = vmatpush1.bf16.msra.mxu0 %v2156
    %2258 = vmatprep.subr.bf16.mxu0 0
    %2259 = vmatpush1.bf16.msra.mxu0 %v2157
    %2260 = vmatprep.subr.bf16.mxu0 0
    %2261 = vmatpush1.bf16.msra.mxu0 %v2158
    %2262 = vmatprep.subr.bf16.mxu0 0
    %2263 = vmatpush1.bf16.msra.mxu0 %v2159
    %2264 = vmatprep.mubr.bf16.mxu0 %v1928
    %2265 = vmatmul.mubr.bf16.gmra.mrb[0].mxu0 %v1927
    %v2266 = vpop.f32.mrb[0].mxu0
    %v2267 = vadd.f32 %v2227, %v2266
    %v2268 = vpop.f32.mrb[0].mxu0
    %v2269 = vpop.f32.mrb[0].mxu0
    %v2270 = vpop.f32.mrb[0].mxu0
    %2271 = vdwg.mxu0
    %v2272 = vtanh.pop %v2267
    %2273 = vst [vmem:[#allocation11] sm:$0xff] %v2272
    // Predicated region
    $region62: #{generator_forward.1} parent=1 // pred_check
      _
    $region63: #{generator_forward.1} parent=1 // pred_check_branch
      %2275 = sbr.rel (0) target = $region65
    $region64: #{generator_forward.1} parent=1 // pred_region
      %s2277 = ssub.s32 128, 128
      %2278 = vsyncadd [#allocation4], %s2277
      %s2280 = sshll.u32 [#allocation11], 4
      %s2281 = int_to_ptr.vmem [resolvable:$true] %s2280
      %2283 = dma.vmem_to_hbm [thread:$0]  %s2281, 128, %s10, [#allocation4]
    $region65: #{generator_forward.1} parent=1 // pred_fallthru
      _
    // Predicated region
    $region66: #{generator_forward.1} parent=1 // pred_check
      _
    $region67: #{generator_forward.1} parent=1 // pred_check_branch
      %2285 = sbr.rel (0) target = $region69
    $region68: #{generator_forward.1} parent=1 // pred_region
      %2286 = dma.done [#allocation4], 128
    $region69: #{generator_forward.1} parent=1 // pred_fallthru
      _
    %2287 = vsyncpa [#allocation3], 1
    %2288 = vsyncpa [#allocation6], 1
    %2289 = vsyncpa [#allocation9], 1
    %2290 = vsyncpa [#allocation4], 1

</llo_original>
